<compile_context>
chip_gen: v7x
topology: tpu7x:2x2x1
jax: 0.10.0
libtpu: 0.0.40
codegen_flags: <defaults>
</compile_context>

<pallas_src>
import jax
import jax.numpy as jnp
from jax import lax
from jax.experimental import pallas as pl
from jax.experimental.pallas import tpu as pltpu


def ti_model_kernel(
    # ---- inputs (all resident in VMEM) ----
    x_ref,                 # (S*Bp, H) f32   seq-major rows: row = t*Bp + b
    wih_ref,               # (H, 8H) cd      input weights, [fwd i,f,g,o | bwd i,f,g,o]
    whh_ref,               # (2, H, 4H) cd   recurrent weights per direction
    bg_ref,                # (1, 8H) f32     combined gate biases (b_ih + b_hh)
    wpf_ref, wpb_ref,      # (H, H) cd each  lstm_proj split halves (fwd / bwd)
    bproj_ref,             # (1, H) f32
    gamma_ref, beta_ref,   # (1, H) f32      LayerNorm
    w1_ref, b1_ref,        # (H, 3H), (1, 3H)  FFN in
    w2_ref, b2_ref,        # (3H, H), (1, H)   FFN out
    wpx_ref, wpm_ref,      # (H, H) cd each  pooling weights for max / mean halves
    bpool_ref,             # (1, H) f32
    wcls_ref, bcls_ref,    # (H, Cp), (1, Cp)  classifier (lane-padded)
    # ---- output ----
    logits_ref,            # (Bp, Cp) f32
    # ---- scratch ----
    gi_ref,                # (S*Bp, 8H) f32  precomputed x @ W_ih + b (both dirs)
    fwd_ref,               # (S*Bp, H) cd    forward hidden states
    bwd_ref,               # (S*Bp, H) cd    backward hidden states
):
    f32 = jnp.float32
    Bp = logits_ref.shape[0]
    SB, H = x_ref.shape
    S = SB // Bp
    H4 = 4 * H
    cd = wih_ref.dtype            # GEMM compute dtype (bf16 or f32)

    # ---- 1) hoisted input->gate projection: ONE (S*Bp,H)x(H,8H) GEMM ----
    xc = x_ref[...].astype(cd)
    gi_ref[...] = (jnp.dot(xc, wih_ref[...], preferred_element_type=f32)
                   + bg_ref[...])

    # ---- 2) fused bidirectional recurrence, (h, c) carried as loop values ----
    def gates(pre, c):            # pre: (Bp, 4H) f32, PyTorch gate order i,f,g,o
        i = jax.nn.sigmoid(pre[:, 0 * H:1 * H])
        f = jax.nn.sigmoid(pre[:, 1 * H:2 * H])
        g = jnp.tanh(pre[:, 2 * H:3 * H])
        o = jax.nn.sigmoid(pre[:, 3 * H:4 * H])
        c = f * c + i * g
        h = o * jnp.tanh(c)
        return h, c

    def step(t, carry):
        hf, cf, hb, cb = carry
        tb = S - 1 - t
        rf = pl.multiple_of(t * Bp, Bp)
        rb = pl.multiple_of(tb * Bp, Bp)
        # Issue both directions' recurrent GEMMs before either direction's
        # activations; whh slices come straight from the VMEM ref (no hoist).
        pre_f = (gi_ref[pl.ds(rf, Bp), pl.ds(0, H4)]
                 + jnp.dot(hf.astype(cd), whh_ref[0], preferred_element_type=f32))
        pre_b = (gi_ref[pl.ds(rb, Bp), pl.ds(H4, H4)]
                 + jnp.dot(hb.astype(cd), whh_ref[1], preferred_element_type=f32))
        hf, cf = gates(pre_f, cf)
        hb, cb = gates(pre_b, cb)
        fwd_ref[pl.ds(rf, Bp), :] = hf.astype(cd)
        bwd_ref[pl.ds(rb, Bp), :] = hb.astype(cd)
        return hf, cf, hb, cb

    z = jnp.zeros((Bp, H), f32)
    lax.fori_loop(0, S, step, (z, z, z, z))

    # ---- 3) lstm_proj (split weights) + residual + two-pass LayerNorm ----
    x32 = x_ref[...]
    proj = (jnp.dot(fwd_ref[...], wpf_ref[...], preferred_element_type=f32)
            + jnp.dot(bwd_ref[...], wpb_ref[...], preferred_element_type=f32)
            + bproj_ref[...])
    y = proj + x32
    mu = jnp.mean(y, axis=-1, keepdims=True)
    d = y - mu
    var = jnp.mean(d * d, axis=-1, keepdims=True)
    y = d * lax.rsqrt(var + 1e-5) * gamma_ref[...] + beta_ref[...]

    # ---- 4) FFN: Linear(H,3H) -> ReLU -> Linear(3H,H), 2-D (S*Bp, .) GEMMs ----
    h1 = jax.nn.relu(
        jnp.dot(y.astype(cd), w1_ref[...], preferred_element_type=f32) + b1_ref[...])
    y = jnp.dot(h1.astype(cd), w2_ref[...], preferred_element_type=f32) + b2_ref[...]

    # ---- 5) 'concat' pooling over time on the live value (no VMEM round-trip).
    # Note: 1/S mean and the raw max are only valid because there is no sequence
    # padding/masking in this model.
    y3 = y.reshape(S, Bp, H)
    mx = jnp.max(y3, axis=0)
    mean_p = jnp.sum(y3, axis=0) * (1.0 / S)

    pooled = jnp.tanh(
        jnp.dot(mx.astype(cd), wpx_ref[...], preferred_element_type=f32)
        + jnp.dot(mean_p.astype(cd), wpm_ref[...], preferred_element_type=f32)
        + bpool_ref[...])

    # ---- 6) classifier (lane-padded to Cp for a dense store) ----
    logits_ref[...] = (
        jnp.dot(pooled.astype(cd), wcls_ref[...], preferred_element_type=f32)
        + bcls_ref[...])


def _round_up(v, m):
    return (v + m - 1) // m * m


def _vmem_capacity_bytes():
    """Device VMEM capacity (falls back to the v7x 64 MiB worst case)."""
    try:
        info = pltpu.get_tpu_info()
        for name in ("vmem_capacity_bytes", "vmem_size_bytes", "vmem_bytes"):
            v = getattr(info, name, None)
            if v:
                return int(v)
    except Exception:
        pass
    return 64 * 2**20


def init_params(key, hidden_size, class_num):
    """Deterministic parameter init in PyTorch (out_features, in_features) layout."""
    H, C = hidden_size, class_num
    ks = jax.random.split(key, 18)

    def u(k, shape, fan_in):
        b = 1.0 / float(fan_in) ** 0.5
        return jax.random.uniform(k, shape, jnp.float32, -b, b)

    return dict(
        wih_f=u(ks[0], (4 * H, H), H), whh_f=u(ks[1], (4 * H, H), H),
        bih_f=u(ks[2], (4 * H,), H), bhh_f=u(ks[3], (4 * H,), H),
        wih_b=u(ks[4], (4 * H, H), H), whh_b=u(ks[5], (4 * H, H), H),
        bih_b=u(ks[6], (4 * H,), H), bhh_b=u(ks[7], (4 * H,), H),
        wproj=u(ks[8], (H, 2 * H), 2 * H), bproj=u(ks[9], (H,), 2 * H),
        gamma=jnp.ones((H,), jnp.float32), beta=jnp.zeros((H,), jnp.float32),
        w1=u(ks[10], (3 * H, H), H), b1=u(ks[11], (3 * H,), H),
        w2=u(ks[12], (H, 3 * H), 3 * H), b2=u(ks[13], (H,), 3 * H),
        wpool=u(ks[14], (H, 2 * H), 2 * H), bpool=u(ks[15], (H,), 2 * H),
        wcls=u(ks[16], (C, H), H), bcls=u(ks[17], (C,), H),
    )


def ti_model_forward(x_bsh, params, labels=None, compute_dtype=jnp.bfloat16):
    """x_bsh: (B, S, H) f32 last_hidden_state. Returns logits or (loss, logits)."""
    B, S, H = x_bsh.shape
    C = params["wcls"].shape[0]
    Bp = _round_up(max(B, 1), 8)          # full f32 sublane tile
    Cp = _round_up(max(C, 1), 128)        # lane-dense logits store
    cd = compute_dtype
    f32 = jnp.float32

    # seq-major activations, batch padded to a full sublane tile
    # TODO(synk): once gridded over t, replace this transpose+pad+reshape with a
    # (B,1,H) BlockSpec over the original (B,S,H) so the DMA does the gather.
    x = jnp.transpose(x_bsh.astype(f32), (1, 0, 2))            # (S, B, H)
    if Bp != B:
        x = jnp.pad(x, ((0, 0), (0, Bp - B), (0, 0)))
    x2d = x.reshape(S * Bp, H)

    # PyTorch (4H, H) weights transposed give (H, 4H) with gate-major columns
    # (i, f, g, o), so the merged-gate layouts are simple transposes/concat.
    wih8 = jnp.concatenate([params["wih_f"].T, params["wih_b"].T], 1).astype(cd)  # (H, 8H)
    whh4 = jnp.stack([params["whh_f"].T, params["whh_b"].T], 0).astype(cd)        # (2, H, 4H)
    bg8 = jnp.concatenate([params["bih_f"] + params["bhh_f"],
                           params["bih_b"] + params["bhh_b"]]).reshape(1, 8 * H).astype(f32)

    wproj, wpool = params["wproj"], params["wpool"]
    wcls = jnp.zeros((H, Cp), f32).at[:, :C].set(params["wcls"].T).astype(cd)
    bcls = jnp.zeros((1, Cp), f32).at[:, :C].set(params["bcls"].reshape(1, C))

    args = (
        x2d,
        wih8, whh4, bg8,
        wproj[:, :H].T.astype(cd), wproj[:, H:].T.astype(cd),
        params["bproj"].reshape(1, H).astype(f32),
        params["gamma"].reshape(1, H).astype(f32),
        params["beta"].reshape(1, H).astype(f32),
        params["w1"].T.astype(cd), params["b1"].reshape(1, -1).astype(f32),
        params["w2"].T.astype(cd), params["b2"].reshape(1, -1).astype(f32),
        wpool[:, :H].T.astype(cd), wpool[:, H:].T.astype(cd),
        params["bpool"].reshape(1, H).astype(f32),
        wcls, bcls,
    )

    scratch = [
        pltpu.VMEM((S * Bp, 8 * H), f32),  # gi: hoisted x @ W_ih (+b), kept f32
        pltpu.VMEM((S * Bp, H), cd),       # fwd hidden
        pltpu.VMEM((S * Bp, H), cd),       # bwd hidden
    ]

    # Tight, generation-aware scoped-VMEM budget: actual footprint + headroom,
    # clamped to the device VMEM capacity (64 MiB on v7x, 128 MiB on v5e/v6e).
    itemsz = jnp.dtype(cd).itemsize
    footprint = sum(int(a.size) * jnp.dtype(a.dtype).itemsize for a in args)
    footprint += S * Bp * 8 * H * 4            # gi (f32)
    footprint += 2 * S * Bp * H * itemsz       # fwd/bwd hidden buffers
    footprint += Bp * Cp * 4                   # padded logits output
    vmem_cap = _vmem_capacity_bytes()
    vmem_limit = int(min(vmem_cap - (8 << 20), footprint + (16 << 20)))
    vmem_limit = max(vmem_limit, 16 << 20)

    logits_pad = pl.pallas_call(
        ti_model_kernel,
        out_shape=jax.ShapeDtypeStruct((Bp, Cp), f32),
        in_specs=[pl.BlockSpec(memory_space=pltpu.MemorySpace.VMEM)] * len(args),
        out_specs=pl.BlockSpec(memory_space=pltpu.MemorySpace.VMEM),
        scratch_shapes=scratch,
        compiler_params=pltpu.CompilerParams(vmem_limit_bytes=vmem_limit),
    )(*args)

    logits = logits_pad[:B, :C]

    if labels is None:
        return logits

    # CustomLoss defaults: focal loss, alpha=1, gamma=2, ce_reduction='none',
    # focal_reduction='mean'.  Tiny elementwise glue kept in plain JAX.
    log_probs = jax.nn.log_softmax(logits, axis=-1)
    ce = -jnp.take_along_axis(log_probs, labels[:, None], axis=-1)[:, 0]
    p_t = jnp.exp(-ce)
    focal = 1.0 * (1.0 - p_t) ** 2 * ce
    return focal.mean(), logits


def ti_model_reference(x_bsh, params):
    """Pure-JAX reference of the PyTorch forward (for numerical sanity check)."""
    x = x_bsh.astype(jnp.float32)
    B, S, H = x.shape

    def lstm_dir(wih, whh, bih, bhh, reverse):
        h = jnp.zeros((B, H), jnp.float32)
        c = jnp.zeros((B, H), jnp.float32)
        out = jnp.zeros((B, S, H), jnp.float32)
        ts = range(S - 1, -1, -1) if reverse else range(S)
        for t in ts:
            gates = x[:, t] @ wih.T + h @ whh.T + bih + bhh
            i = jax.nn.sigmoid(gates[:, :H])
            f = jax.nn.sigmoid(gates[:, H:2 * H])
            g = jnp.tanh(gates[:, 2 * H:3 * H])
            o = jax.nn.sigmoid(gates[:, 3 * H:])
            c = f * c + i * g
            h = o * jnp.tanh(c)
            out = out.at[:, t].set(h)
        return out

    fwd = lstm_dir(params["wih_f"], params["whh_f"], params["bih_f"], params["bhh_f"], False)
    bwd = lstm_dir(params["wih_b"], params["whh_b"], params["bih_b"], params["bhh_b"], True)
    lstm_out = jnp.concatenate([fwd, bwd], axis=-1)
    proj = lstm_out @ params["wproj"].T + params["bproj"]
    y = proj + x
    mean = y.mean(-1, keepdims=True)
    var = ((y - mean) ** 2).mean(-1, keepdims=True)
    y = (y - mean) / jnp.sqrt(var + 1e-5) * params["gamma"] + params["beta"]
    h1 = jax.nn.relu(y @ params["w1"].T + params["b1"])
    y = h1 @ params["w2"].T + params["b2"]
    cat = jnp.concatenate([y.max(axis=1), y.mean(axis=1)], axis=-1)
    pooled = jnp.tanh(cat @ params["wpool"].T + params["bpool"])
    return pooled @ params["wcls"].T + params["bcls"]


if __name__ == "__main__":
    B, S, H, C = 2, 8, 32, 5          # batch, seq_len, hidden_size, num classes
    key = jax.random.PRNGKey(0)
    kx, kp, kl = jax.random.split(key, 3)

    # Stand-in for Qwen2-VL last_hidden_state (B, S, H), cast to float32 as in forward().
    x = jax.random.normal(kx, (B, S, H), jnp.float32)
    params = init_params(kp, H, C)

    ref = ti_model_reference(x, params)

    # f32 GEMM path: tight check against the pure-JAX reference.
    logits_f32 = jax.block_until_ready(
        ti_model_forward(x, params, compute_dtype=jnp.float32))
    assert logits_f32.shape == (B, C)
    assert float(jnp.max(jnp.abs(logits_f32 - ref))) < 5e-2

    # bf16 GEMM path (default, v6e/v7x-optimized configuration): loose check.
    logits_bf16 = jax.block_until_ready(ti_model_forward(x, params))
    assert logits_bf16.shape == (B, C)
    assert float(jnp.max(jnp.abs(logits_bf16 - ref))) < 2.5e-1

    labels = jax.random.randint(kl, (B,), 0, C)
    loss, _ = ti_model_forward(x, params, labels)
    jax.block_until_ready(loss)

    print("KERNEL_OK")
</pallas_src>

<mosaic_0001>
module attributes {stable_mosaic.version = 11 : i64} {
  func.func @ti_model_kernel(%arg0: memref<64x32xf32, #tpu.memory_space<vmem>>, %arg1: memref<32x256xf32, #tpu.memory_space<vmem>>, %arg2: memref<2x32x128xf32, #tpu.memory_space<vmem>>, %arg3: memref<1x256xf32, #tpu.memory_space<vmem>>, %arg4: memref<32x32xf32, #tpu.memory_space<vmem>>, %arg5: memref<32x32xf32, #tpu.memory_space<vmem>>, %arg6: memref<1x32xf32, #tpu.memory_space<vmem>>, %arg7: memref<1x32xf32, #tpu.memory_space<vmem>>, %arg8: memref<1x32xf32, #tpu.memory_space<vmem>>, %arg9: memref<32x96xf32, #tpu.memory_space<vmem>>, %arg10: memref<1x96xf32, #tpu.memory_space<vmem>>, %arg11: memref<96x32xf32, #tpu.memory_space<vmem>>, %arg12: memref<1x32xf32, #tpu.memory_space<vmem>>, %arg13: memref<32x32xf32, #tpu.memory_space<vmem>>, %arg14: memref<32x32xf32, #tpu.memory_space<vmem>>, %arg15: memref<1x32xf32, #tpu.memory_space<vmem>>, %arg16: memref<32x128xf32, #tpu.memory_space<vmem>>, %arg17: memref<1x128xf32, #tpu.memory_space<vmem>>, %arg18: memref<8x128xf32, #tpu.memory_space<vmem>>, %arg19: memref<64x256xf32, #tpu.memory_space<vmem>>, %arg20: memref<64x32xf32, #tpu.memory_space<vmem>>, %arg21: memref<64x32xf32, #tpu.memory_space<vmem>>) attributes {dimension_semantics = [], scalar_prefetch = 0 : i64, scratch_operands = 3 : i64, tpu.core_type = #tpu.core_type<tc>} {
    %c0 = arith.constant 0 : index
    %c0_0 = arith.constant 0 : index
    %0 = vector.load %arg0[%c0, %c0_0] : memref<64x32xf32, #tpu.memory_space<vmem>>, vector<64x32xf32>
    %c0_1 = arith.constant 0 : index
    %c0_2 = arith.constant 0 : index
    %1 = vector.load %arg1[%c0_1, %c0_2] : memref<32x256xf32, #tpu.memory_space<vmem>>, vector<32x256xf32>
    %cst = arith.constant dense<0.000000e+00> : vector<64x256xf32>
    %2 = tpu.matmul %0, %1, %cst {dimension_numbers = #tpu.dot_dimension_numbers<[1], [0], [0], [1], [0, 0, 1, 1], [], []>} : vector<64x32xf32>, vector<32x256xf32>, vector<64x256xf32> -> vector<64x256xf32>
    %c0_3 = arith.constant 0 : index
    %c0_4 = arith.constant 0 : index
    %3 = vector.load %arg3[%c0_3, %c0_4] : memref<1x256xf32, #tpu.memory_space<vmem>>, vector<1x256xf32>
    %4 = vector.broadcast %3 : vector<1x256xf32> to vector<64x256xf32>
    %5 = arith.addf %2, %4 : vector<64x256xf32>
    %c0_5 = arith.constant 0 : index
    %c0_6 = arith.constant 0 : index
    %6 = vector.load %arg19[%c0_5, %c0_6] : memref<64x256xf32, #tpu.memory_space<vmem>>, vector<64x256xf32>
    tpu.vector_store %arg19[%c0_5, %c0_6], %5 {strides = array<i32>} : memref<64x256xf32, #tpu.memory_space<vmem>>, vector<64x256xf32>,
    %cst_7 = arith.constant 0.000000e+00 : f32
    %7 = vector.broadcast %cst_7 : f32 to vector<8x32xf32>
    %c0_i32 = arith.constant 0 : i32
    %c8_i32 = arith.constant 8 : i32
    %8 = arith.addi %c0_i32, %c8_i32 : i32
    %c1_i32 = arith.constant 1 : i32
    %9:4 = scf.for %arg22 = %c0_i32 to %8 step %c1_i32 iter_args(%arg23 = %7, %arg24 = %7, %arg25 = %7, %arg26 = %7) -> (vector<8x32xf32>, vector<8x32xf32>, vector<8x32xf32>, vector<8x32xf32>)  : i32 {
      %c7_i32 = arith.constant 7 : i32
      %76 = arith.subi %c7_i32, %arg22 : i32
      %c8_i32_61 = arith.constant 8 : i32
      %77 = arith.muli %arg22, %c8_i32_61 : i32
      %78 = tpu.assume_multiple %77, 8 : i32
      %c8_i32_62 = arith.constant 8 : i32
      %79 = arith.muli %76, %c8_i32_62 : i32
      %80 = tpu.assume_multiple %79, 8 : i32
      %81 = arith.index_cast %78 : i32 to index
      %c0_63 = arith.constant 0 : index
      %82 = vector.load %arg19[%81, %c0_63] : memref<64x256xf32, #tpu.memory_space<vmem>>, vector<8x128xf32>
      %c0_64 = arith.constant 0 : index
      %c0_65 = arith.constant 0 : index
      %c0_66 = arith.constant 0 : index
      %83 = vector.load %arg2[%c0_64, %c0_65, %c0_66] : memref<2x32x128xf32, #tpu.memory_space<vmem>>, vector<1x32x128xf32>
      %84 = vector.shape_cast %83 : vector<1x32x128xf32> to vector<32x128xf32>
      %cst_67 = arith.constant dense<0.000000e+00> : vector<8x128xf32>
      %85 = tpu.matmul %arg23, %84, %cst_67 {dimension_numbers = #tpu.dot_dimension_numbers<[1], [0], [0], [1], [0, 0, 1, 1], [], []>} : vector<8x32xf32>, vector<32x128xf32>, vector<8x128xf32> -> vector<8x128xf32>
      %86 = arith.addf %82, %85 : vector<8x128xf32>
      %87 = arith.index_cast %80 : i32 to index
      %c128 = arith.constant 128 : index
      %88 = vector.load %arg19[%87, %c128] : memref<64x256xf32, #tpu.memory_space<vmem>>, vector<8x128xf32>
      %c1 = arith.constant 1 : index
      %c0_68 = arith.constant 0 : index
      %c0_69 = arith.constant 0 : index
      %89 = vector.load %arg2[%c1, %c0_68, %c0_69] : memref<2x32x128xf32, #tpu.memory_space<vmem>>, vector<1x32x128xf32>
      %90 = vector.shape_cast %89 : vector<1x32x128xf32> to vector<32x128xf32>
      %cst_70 = arith.constant dense<0.000000e+00> : vector<8x128xf32>
      %91 = tpu.matmul %arg25, %90, %cst_70 {dimension_numbers = #tpu.dot_dimension_numbers<[1], [0], [0], [1], [0, 0, 1, 1], [], []>} : vector<8x32xf32>, vector<32x128xf32>, vector<8x128xf32> -> vector<8x128xf32>
      %92 = arith.addf %88, %91 : vector<8x128xf32>
      %93 = vector.extract_strided_slice %86 {offsets = [0, 0], sizes = [8, 32], strides = [1, 1]} : vector<8x128xf32> to vector<8x32xf32>
      %94 = arith.negf %93 : vector<8x32xf32>
      %95 = math.exp %94 : vector<8x32xf32>
      %cst_71 = arith.constant 1.000000e+00 : f32
      %96 = vector.broadcast %cst_71 : f32 to vector<8x32xf32>
      %97 = arith.addf %96, %95 : vector<8x32xf32>
      %98 = arith.divf %96, %97 : vector<8x32xf32>
      %99 = vector.extract_strided_slice %86 {offsets = [0, 32], sizes = [8, 32], strides = [1, 1]} : vector<8x128xf32> to vector<8x32xf32>
      %100 = arith.negf %99 : vector<8x32xf32>
      %101 = math.exp %100 : vector<8x32xf32>
      %cst_72 = arith.constant 1.000000e+00 : f32
      %102 = vector.broadcast %cst_72 : f32 to vector<8x32xf32>
      %103 = arith.addf %102, %101 : vector<8x32xf32>
      %104 = arith.divf %102, %103 : vector<8x32xf32>
      %105 = vector.extract_strided_slice %86 {offsets = [0, 64], sizes = [8, 32], strides = [1, 1]} : vector<8x128xf32> to vector<8x32xf32>
      %106 = math.tanh %105 : vector<8x32xf32>
      %107 = vector.extract_strided_slice %86 {offsets = [0, 96], sizes = [8, 32], strides = [1, 1]} : vector<8x128xf32> to vector<8x32xf32>
      %108 = arith.negf %107 : vector<8x32xf32>
      %109 = math.exp %108 : vector<8x32xf32>
      %cst_73 = arith.constant 1.000000e+00 : f32
      %110 = vector.broadcast %cst_73 : f32 to vector<8x32xf32>
      %111 = arith.addf %110, %109 : vector<8x32xf32>
      %112 = arith.divf %110, %111 : vector<8x32xf32>
      %113 = arith.mulf %104, %arg24 : vector<8x32xf32>
      %114 = arith.mulf %98, %106 : vector<8x32xf32>
      %115 = arith.addf %113, %114 : vector<8x32xf32>
      %116 = math.tanh %115 : vector<8x32xf32>
      %117 = arith.mulf %112, %116 : vector<8x32xf32>
      %118 = vector.extract_strided_slice %92 {offsets = [0, 0], sizes = [8, 32], strides = [1, 1]} : vector<8x128xf32> to vector<8x32xf32>
      %119 = arith.negf %118 : vector<8x32xf32>
      %120 = math.exp %119 : vector<8x32xf32>
      %cst_74 = arith.constant 1.000000e+00 : f32
      %121 = vector.broadcast %cst_74 : f32 to vector<8x32xf32>
      %122 = arith.addf %121, %120 : vector<8x32xf32>
      %123 = arith.divf %121, %122 : vector<8x32xf32>
      %124 = vector.extract_strided_slice %92 {offsets = [0, 32], sizes = [8, 32], strides = [1, 1]} : vector<8x128xf32> to vector<8x32xf32>
      %125 = arith.negf %124 : vector<8x32xf32>
      %126 = math.exp %125 : vector<8x32xf32>
      %cst_75 = arith.constant 1.000000e+00 : f32
      %127 = vector.broadcast %cst_75 : f32 to vector<8x32xf32>
      %128 = arith.addf %127, %126 : vector<8x32xf32>
      %129 = arith.divf %127, %128 : vector<8x32xf32>
      %130 = vector.extract_strided_slice %92 {offsets = [0, 64], sizes = [8, 32], strides = [1, 1]} : vector<8x128xf32> to vector<8x32xf32>
      %131 = math.tanh %130 : vector<8x32xf32>
      %132 = vector.extract_strided_slice %92 {offsets = [0, 96], sizes = [8, 32], strides = [1, 1]} : vector<8x128xf32> to vector<8x32xf32>
      %133 = arith.negf %132 : vector<8x32xf32>
      %134 = math.exp %133 : vector<8x32xf32>
      %cst_76 = arith.constant 1.000000e+00 : f32
      %135 = vector.broadcast %cst_76 : f32 to vector<8x32xf32>
      %136 = arith.addf %135, %134 : vector<8x32xf32>
      %137 = arith.divf %135, %136 : vector<8x32xf32>
      %138 = arith.mulf %129, %arg26 : vector<8x32xf32>
      %139 = arith.mulf %123, %131 : vector<8x32xf32>
      %140 = arith.addf %138, %139 : vector<8x32xf32>
      %141 = math.tanh %140 : vector<8x32xf32>
      %142 = arith.mulf %137, %141 : vector<8x32xf32>
      %143 = arith.index_cast %78 : i32 to index
      %c0_77 = arith.constant 0 : index
      %144 = vector.load %arg20[%143, %c0_77] : memref<64x32xf32, #tpu.memory_space<vmem>>, vector<8x32xf32>
      tpu.vector_store %arg20[%143, %c0_77], %117 {strides = array<i32>} : memref<64x32xf32, #tpu.memory_space<vmem>>, vector<8x32xf32>,
      %145 = arith.index_cast %80 : i32 to index
      %c0_78 = arith.constant 0 : index
      %146 = vector.load %arg21[%145, %c0_78] : memref<64x32xf32, #tpu.memory_space<vmem>>, vector<8x32xf32>
      tpu.vector_store %arg21[%145, %c0_78], %142 {strides = array<i32>} : memref<64x32xf32, #tpu.memory_space<vmem>>, vector<8x32xf32>,
      scf.yield %117, %115, %142, %140 : vector<8x32xf32>, vector<8x32xf32>, vector<8x32xf32>, vector<8x32xf32>
    }
    %c8_i32_8 = arith.constant 8 : i32
    %c0_9 = arith.constant 0 : index
    %c0_10 = arith.constant 0 : index
    %10 = vector.load %arg0[%c0_9, %c0_10] : memref<64x32xf32, #tpu.memory_space<vmem>>, vector<64x32xf32>
    %c0_11 = arith.constant 0 : index
    %c0_12 = arith.constant 0 : index
    %11 = vector.load %arg20[%c0_11, %c0_12] : memref<64x32xf32, #tpu.memory_space<vmem>>, vector<64x32xf32>
    %c0_13 = arith.constant 0 : index
    %c0_14 = arith.constant 0 : index
    %12 = vector.load %arg4[%c0_13, %c0_14] : memref<32x32xf32, #tpu.memory_space<vmem>>, vector<32x32xf32>
    %cst_15 = arith.constant dense<0.000000e+00> : vector<64x32xf32>
    %13 = tpu.matmul %11, %12, %cst_15 {dimension_numbers = #tpu.dot_dimension_numbers<[1], [0], [0], [1], [0, 0, 1, 1], [], []>} : vector<64x32xf32>, vector<32x32xf32>, vector<64x32xf32> -> vector<64x32xf32>
    %c0_16 = arith.constant 0 : index
    %c0_17 = arith.constant 0 : index
    %14 = vector.load %arg21[%c0_16, %c0_17] : memref<64x32xf32, #tpu.memory_space<vmem>>, vector<64x32xf32>
    %c0_18 = arith.constant 0 : index
    %c0_19 = arith.constant 0 : index
    %15 = vector.load %arg5[%c0_18, %c0_19] : memref<32x32xf32, #tpu.memory_space<vmem>>, vector<32x32xf32>
    %cst_20 = arith.constant dense<0.000000e+00> : vector<64x32xf32>
    %16 = tpu.matmul %14, %15, %cst_20 {dimension_numbers = #tpu.dot_dimension_numbers<[1], [0], [0], [1], [0, 0, 1, 1], [], []>} : vector<64x32xf32>, vector<32x32xf32>, vector<64x32xf32> -> vector<64x32xf32>
    %17 = arith.addf %13, %16 : vector<64x32xf32>
    %c0_21 = arith.constant 0 : index
    %c0_22 = arith.constant 0 : index
    %18 = vector.load %arg6[%c0_21, %c0_22] : memref<1x32xf32, #tpu.memory_space<vmem>>, vector<1x32xf32>
    %19 = vector.broadcast %18 : vector<1x32xf32> to vector<64x32xf32>
    %20 = arith.addf %17, %19 : vector<64x32xf32>
    %21 = arith.addf %20, %10 : vector<64x32xf32>
    %cst_23 = arith.constant dense<0.000000e+00> : vector<64xf32>
    %22 = vector.multi_reduction <add>, %21, %cst_23 [1] : vector<64x32xf32> to vector<64xf32>
    %23 = vector.shape_cast %22 : vector<64xf32> to vector<64x1xf32>
    %cst_24 = arith.constant 3.200000e+01 : f32
    %24 = vector.broadcast %cst_24 : f32 to vector<64x1xf32>
    %25 = arith.divf %23, %24 : vector<64x1xf32>
    %26 = vector.broadcast %25 : vector<64x1xf32> to vector<64x32xf32>
    %27 = arith.subf %21, %26 : vector<64x32xf32>
    %28 = arith.mulf %27, %27 : vector<64x32xf32>
    %cst_25 = arith.constant dense<0.000000e+00> : vector<64xf32>
    %29 = vector.multi_reduction <add>, %28, %cst_25 [1] : vector<64x32xf32> to vector<64xf32>
    %30 = vector.shape_cast %29 : vector<64xf32> to vector<64x1xf32>
    %cst_26 = arith.constant 3.200000e+01 : f32
    %31 = vector.broadcast %cst_26 : f32 to vector<64x1xf32>
    %32 = arith.divf %30, %31 : vector<64x1xf32>
    %cst_27 = arith.constant 9.99999974E-6 : f32
    %33 = vector.broadcast %cst_27 : f32 to vector<64x1xf32>
    %34 = arith.addf %32, %33 : vector<64x1xf32>
    %35 = math.rsqrt %34 : vector<64x1xf32>
    %36 = vector.broadcast %35 : vector<64x1xf32> to vector<64x32xf32>
    %37 = arith.mulf %27, %36 : vector<64x32xf32>
    %c0_28 = arith.constant 0 : index
    %c0_29 = arith.constant 0 : index
    %38 = vector.load %arg7[%c0_28, %c0_29] : memref<1x32xf32, #tpu.memory_space<vmem>>, vector<1x32xf32>
    %39 = vector.broadcast %38 : vector<1x32xf32> to vector<64x32xf32>
    %40 = arith.mulf %37, %39 : vector<64x32xf32>
    %c0_30 = arith.constant 0 : index
    %c0_31 = arith.constant 0 : index
    %41 = vector.load %arg8[%c0_30, %c0_31] : memref<1x32xf32, #tpu.memory_space<vmem>>, vector<1x32xf32>
    %42 = vector.broadcast %41 : vector<1x32xf32> to vector<64x32xf32>
    %43 = arith.addf %40, %42 : vector<64x32xf32>
    %c0_32 = arith.constant 0 : index
    %c0_33 = arith.constant 0 : index
    %44 = vector.load %arg9[%c0_32, %c0_33] : memref<32x96xf32, #tpu.memory_space<vmem>>, vector<32x96xf32>
    %cst_34 = arith.constant dense<0.000000e+00> : vector<64x96xf32>
    %45 = tpu.matmul %43, %44, %cst_34 {dimension_numbers = #tpu.dot_dimension_numbers<[1], [0], [0], [1], [0, 0, 1, 1], [], []>} : vector<64x32xf32>, vector<32x96xf32>, vector<64x96xf32> -> vector<64x96xf32>
    %c0_35 = arith.constant 0 : index
    %c0_36 = arith.constant 0 : index
    %46 = vector.load %arg10[%c0_35, %c0_36] : memref<1x96xf32, #tpu.memory_space<vmem>>, vector<1x96xf32>
    %47 = vector.broadcast %46 : vector<1x96xf32> to vector<64x96xf32>
    %48 = arith.addf %45, %47 : vector<64x96xf32>
    %cst_37 = arith.constant 0.000000e+00 : f32
    %49 = vector.broadcast %cst_37 : f32 to vector<64x96xf32>
    %50 = arith.maximumf %48, %49 : vector<64x96xf32>
    %c0_38 = arith.constant 0 : index
    %c0_39 = arith.constant 0 : index
    %51 = vector.load %arg11[%c0_38, %c0_39] : memref<96x32xf32, #tpu.memory_space<vmem>>, vector<96x32xf32>
    %cst_40 = arith.constant dense<0.000000e+00> : vector<64x32xf32>
    %52 = tpu.matmul %50, %51, %cst_40 {dimension_numbers = #tpu.dot_dimension_numbers<[1], [0], [0], [1], [0, 0, 1, 1], [], []>} : vector<64x96xf32>, vector<96x32xf32>, vector<64x32xf32> -> vector<64x32xf32>
    %c0_41 = arith.constant 0 : index
    %c0_42 = arith.constant 0 : index
    %53 = vector.load %arg12[%c0_41, %c0_42] : memref<1x32xf32, #tpu.memory_space<vmem>>, vector<1x32xf32>
    %54 = vector.broadcast %53 : vector<1x32xf32> to vector<64x32xf32>
    %55 = arith.addf %52, %54 : vector<64x32xf32>
    %56 = vector.shape_cast %55 : vector<64x32xf32> to vector<8x8x32xf32>
    %cst_43 = arith.constant dense<0xFF800000> : vector<8x32xf32>
    %57 = vector.multi_reduction <maximumf>, %56, %cst_43 [0] : vector<8x8x32xf32> to vector<8x32xf32>
    %cst_44 = arith.constant dense<0.000000e+00> : vector<8x32xf32>
    %58 = vector.multi_reduction <add>, %56, %cst_44 [0] : vector<8x8x32xf32> to vector<8x32xf32>
    %cst_45 = arith.constant 1.250000e-01 : f32
    %59 = vector.broadcast %cst_45 : f32 to vector<8x32xf32>
    %60 = arith.mulf %58, %59 : vector<8x32xf32>
    %c0_46 = arith.constant 0 : index
    %c0_47 = arith.constant 0 : index
    %61 = vector.load %arg13[%c0_46, %c0_47] : memref<32x32xf32, #tpu.memory_space<vmem>>, vector<32x32xf32>
    %cst_48 = arith.constant dense<0.000000e+00> : vector<8x32xf32>
    %62 = tpu.matmul %57, %61, %cst_48 {dimension_numbers = #tpu.dot_dimension_numbers<[1], [0], [0], [1], [0, 0, 1, 1], [], []>} : vector<8x32xf32>, vector<32x32xf32>, vector<8x32xf32> -> vector<8x32xf32>
    %c0_49 = arith.constant 0 : index
    %c0_50 = arith.constant 0 : index
    %63 = vector.load %arg14[%c0_49, %c0_50] : memref<32x32xf32, #tpu.memory_space<vmem>>, vector<32x32xf32>
    %cst_51 = arith.constant dense<0.000000e+00> : vector<8x32xf32>
    %64 = tpu.matmul %60, %63, %cst_51 {dimension_numbers = #tpu.dot_dimension_numbers<[1], [0], [0], [1], [0, 0, 1, 1], [], []>} : vector<8x32xf32>, vector<32x32xf32>, vector<8x32xf32> -> vector<8x32xf32>
    %65 = arith.addf %62, %64 : vector<8x32xf32>
    %c0_52 = arith.constant 0 : index
    %c0_53 = arith.constant 0 : index
    %66 = vector.load %arg15[%c0_52, %c0_53] : memref<1x32xf32, #tpu.memory_space<vmem>>, vector<1x32xf32>
    %67 = vector.broadcast %66 : vector<1x32xf32> to vector<8x32xf32>
    %68 = arith.addf %65, %67 : vector<8x32xf32>
    %69 = math.tanh %68 : vector<8x32xf32>
    %c0_54 = arith.constant 0 : index
    %c0_55 = arith.constant 0 : index
    %70 = vector.load %arg16[%c0_54, %c0_55] : memref<32x128xf32, #tpu.memory_space<vmem>>, vector<32x128xf32>
    %cst_56 = arith.constant dense<0.000000e+00> : vector<8x128xf32>
    %71 = tpu.matmul %69, %70, %cst_56 {dimension_numbers = #tpu.dot_dimension_numbers<[1], [0], [0], [1], [0, 0, 1, 1], [], []>} : vector<8x32xf32>, vector<32x128xf32>, vector<8x128xf32> -> vector<8x128xf32>
    %c0_57 = arith.constant 0 : index
    %c0_58 = arith.constant 0 : index
    %72 = vector.load %arg17[%c0_57, %c0_58] : memref<1x128xf32, #tpu.memory_space<vmem>>, vector<1x128xf32>
    %73 = vector.broadcast %72 : vector<1x128xf32> to vector<8x128xf32>
    %74 = arith.addf %71, %73 : vector<8x128xf32>
    %c0_59 = arith.constant 0 : index
    %c0_60 = arith.constant 0 : index
    %75 = vector.load %arg18[%c0_59, %c0_60] : memref<8x128xf32, #tpu.memory_space<vmem>>, vector<8x128xf32>
    tpu.vector_store %arg18[%c0_59, %c0_60], %74 {strides = array<i32>} : memref<8x128xf32, #tpu.memory_space<vmem>>, vector<8x128xf32>,
    return
  }
}

</mosaic_0001>

<llo_original>
// kernel: tpu_custom_call.1
$region0: #{tpu_custom_call.1}
  #allocation0 [shape = 'u32[]', space=smem, size = 0x4, offset = 0x4, fixed_abs, tag = 'smem constant byte address 0x4 - core index']
  #allocation1 [shape = 'u32[144,128]{1,0:T(1,128)}', space=vmem, size = 0x12000, scoped, tag = 'internal scratch']
  #allocation2 [shape = 'f32[64,256]{1,0:T(8,128)}', space=vmem, size = 0x10000, scoped, tag = 'scratch operand']
  #allocation3 [shape = 'f32[64,32]{1,0:T(8,128)}', space=vmem, size = 0x8000, scoped, tag = 'scratch operand']
  #allocation4 [shape = 'f32[64,32]{1,0:T(8,128)}', space=vmem, size = 0x8000, scoped, tag = 'scratch operand']
  %s0 = inlined_call_operand.vmem [shape: f32[64,32], index: 0, kind: input, shape index: {}]
  %s1 = inlined_call_operand.vmem [shape: f32[32,256], index: 1, kind: input, shape index: {}]
  %s2 = inlined_call_operand.vmem [shape: f32[2,32,128], index: 2, kind: input, shape index: {}]
  %s3 = inlined_call_operand.vmem [shape: f32[1,256], index: 3, kind: input, shape index: {}]
  %s4 = inlined_call_operand.vmem [shape: f32[32,32], index: 4, kind: input, shape index: {}]
  %s5 = inlined_call_operand.vmem [shape: f32[32,32], index: 5, kind: input, shape index: {}]
  %s6 = inlined_call_operand.hbm [shape: f32[1,32], index: 6, kind: input, shape index: {}]
  %s7 = inlined_call_operand.hbm [shape: f32[1,32], index: 7, kind: input, shape index: {}]
  %s8 = inlined_call_operand.hbm [shape: f32[1,32], index: 8, kind: input, shape index: {}]
  %s9 = inlined_call_operand.vmem [shape: f32[32,96], index: 9, kind: input, shape index: {}]
  %s10 = inlined_call_operand.vmem [shape: f32[1,96], index: 10, kind: input, shape index: {}]
  %s11 = inlined_call_operand.vmem [shape: f32[96,32], index: 11, kind: input, shape index: {}]
  %s12 = inlined_call_operand.vmem [shape: f32[1,32], index: 12, kind: input, shape index: {}]
  %s13 = inlined_call_operand.vmem [shape: f32[32,32], index: 13, kind: input, shape index: {}]
  %s14 = inlined_call_operand.hbm [shape: f32[32,32], index: 14, kind: input, shape index: {}]
  %s15 = inlined_call_operand.vmem [shape: f32[1,32], index: 15, kind: input, shape index: {}]
  %s16 = inlined_call_operand.hbm [shape: f32[32,128], index: 16, kind: input, shape index: {}]
  %s17 = inlined_call_operand.vmem [shape: f32[1,128], index: 17, kind: input, shape index: {}]
  %s18 = inlined_call_operand.hbm [shape: f32[8,128], index: 18, kind: output, shape index: {}]
  %s19 = sld [smem:[#allocation0]]
  $region109: #{tpu_custom_call.1} parent=0
    _
  %s21 = ssub.s32 1, %s19
  %s22 = scalar_select 0, %s21, %s19
  $region1: #{tpu_custom_call.1} parent=0
    #allocation5 [shape = 'u8[512]{0}', space=vmem, size = 0x400, scoped, tag = 'input window, operand 6, single buffered']
    #allocation6 [shape = 's32[1]{0}', space=sflag, size = 0x4, scoped, tag = 'scoped memory for tpu_custom_call.1']
    #allocation7 [shape = 's32[1]{0}', space=sflag, size = 0x4, scoped, tag = 'scoped memory for tpu_custom_call.1']
    #allocation8 [shape = 'u8[512]{0}', space=vmem, size = 0x400, scoped, tag = 'input window, operand 7, single buffered']
    #allocation9 [shape = 's32[1]{0}', space=sflag, size = 0x4, scoped, tag = 'scoped memory for tpu_custom_call.1']
    #allocation10 [shape = 'u8[512]{0}', space=vmem, size = 0x400, scoped, tag = 'input window, operand 8, single buffered']
    #allocation11 [shape = 'u8[16384]{0}', space=vmem, size = 0x4000, scoped, tag = 'input window, operand 14, single buffered']
    #allocation12 [shape = 's32[1]{0}', space=sflag, size = 0x4, scoped, tag = 'scoped memory for tpu_custom_call.1']
    #allocation13 [shape = 'u8[16384]{0}', space=vmem, size = 0x4000, scoped, tag = 'input window, operand 16, single buffered']
    #allocation14 [shape = 'u8[4096]{0}', space=vmem, size = 0x1000, scoped, tag = 'output window, operand 0, single buffered']
    %23 = vsyncpa [#allocation6], 0
    %24 = vsyncpa [#allocation9], 0
    %25 = vsyncpa [#allocation12], 0
    %26 = vsyncpa [#allocation7], 0
    // Predicated region
    $region2: #{tpu_custom_call.1} parent=1 // pred_check
      _
    $region3: #{tpu_custom_call.1} parent=1 // pred_check_branch
      %28 = sbr.rel (0) target = $region5
    $region4: #{tpu_custom_call.1} parent=1 // pred_region
      _
    $region5: #{tpu_custom_call.1} parent=1 // pred_fallthru
      _
    // Predicated region
    $region6: #{tpu_custom_call.1} parent=1 // pred_check
      _
    $region7: #{tpu_custom_call.1} parent=1 // pred_check_branch
      %30 = sbr.rel (0) target = $region9
    $region8: #{tpu_custom_call.1} parent=1 // pred_region
      _
    $region9: #{tpu_custom_call.1} parent=1 // pred_fallthru
      _
    // Predicated region
    $region10: #{tpu_custom_call.1} parent=1 // pred_check
      _
    $region11: #{tpu_custom_call.1} parent=1 // pred_check_branch
      %32 = sbr.rel (0) target = $region13
    $region12: #{tpu_custom_call.1} parent=1 // pred_region
      _
    $region13: #{tpu_custom_call.1} parent=1 // pred_fallthru
      _
    // Predicated region
    $region14: #{tpu_custom_call.1} parent=1 // pred_check
      _
    $region15: #{tpu_custom_call.1} parent=1 // pred_check_branch
      %34 = sbr.rel (0) target = $region17
    $region16: #{tpu_custom_call.1} parent=1 // pred_region
      _
    $region17: #{tpu_custom_call.1} parent=1 // pred_fallthru
      _
    // Predicated region
    $region18: #{tpu_custom_call.1} parent=1 // pred_check
      _
    $region19: #{tpu_custom_call.1} parent=1 // pred_check_branch
      %36 = sbr.rel (0) target = $region21
    $region20: #{tpu_custom_call.1} parent=1 // pred_region
      _
    $region21: #{tpu_custom_call.1} parent=1 // pred_fallthru
      _
    // Predicated region
    $region22: #{tpu_custom_call.1} parent=1 // pred_check
      _
    $region23: #{tpu_custom_call.1} parent=1 // pred_check_branch
      %38 = sbr.rel (0) target = $region25
    $region24: #{tpu_custom_call.1} parent=1 // pred_region
      _
    $region25: #{tpu_custom_call.1} parent=1 // pred_fallthru
      _
    // Predicated region
    $region26: #{tpu_custom_call.1} parent=1 // pred_check
      _
    $region27: #{tpu_custom_call.1} parent=1 // pred_check_branch
      %40 = sbr.rel (0) target = $region29
    $region28: #{tpu_custom_call.1} parent=1 // pred_region
      %s42 = ssub.s32 16, 16
      %43 = vsyncadd [#allocation6], %s42
      %s45 = sshll.u32 [#allocation5], 4
      %s46 = int_to_ptr.vmem [resolvable:$true] %s45
      %48 = dma.hbm_to_vmem [thread:$0]  %s6, 16, %s46, [#allocation6]
    $region29: #{tpu_custom_call.1} parent=1 // pred_fallthru
      _
    // Predicated region
    $region30: #{tpu_custom_call.1} parent=1 // pred_check
      _
    $region31: #{tpu_custom_call.1} parent=1 // pred_check_branch
      %50 = sbr.rel (0) target = $region33
    $region32: #{tpu_custom_call.1} parent=1 // pred_region
      %s52 = ssub.s32 16, 16
      %53 = vsyncadd [#allocation9], %s52
      %s55 = sshll.u32 [#allocation8], 4
      %s56 = int_to_ptr.vmem [resolvable:$true] %s55
      %58 = dma.hbm_to_vmem [thread:$0]  %s7, 16, %s56, [#allocation9]
    $region33: #{tpu_custom_call.1} parent=1 // pred_fallthru
      _
    // Predicated region
    $region34: #{tpu_custom_call.1} parent=1 // pred_check
      _
    $region35: #{tpu_custom_call.1} parent=1 // pred_check_branch
      %60 = sbr.rel (0) target = $region37
    $region36: #{tpu_custom_call.1} parent=1 // pred_region
      %s62 = ssub.s32 16, 16
      %63 = vsyncadd [#allocation9], %s62
      %s65 = sshll.u32 [#allocation10], 4
      %s66 = int_to_ptr.vmem [resolvable:$true] %s65
      %68 = dma.hbm_to_vmem [thread:$0]  %s8, 16, %s66, [#allocation9]
    $region37: #{tpu_custom_call.1} parent=1 // pred_fallthru
      _
    // Predicated region
    $region38: #{tpu_custom_call.1} parent=1 // pred_check
      _
    $region39: #{tpu_custom_call.1} parent=1 // pred_check_branch
      %70 = sbr.rel (0) target = $region41
    $region40: #{tpu_custom_call.1} parent=1 // pred_region
      _
    $region41: #{tpu_custom_call.1} parent=1 // pred_fallthru
      _
    // Predicated region
    $region42: #{tpu_custom_call.1} parent=1 // pred_check
      _
    $region43: #{tpu_custom_call.1} parent=1 // pred_check_branch
      %72 = sbr.rel (0) target = $region45
    $region44: #{tpu_custom_call.1} parent=1 // pred_region
      _
    $region45: #{tpu_custom_call.1} parent=1 // pred_fallthru
      _
    // Predicated region
    $region46: #{tpu_custom_call.1} parent=1 // pred_check
      _
    $region47: #{tpu_custom_call.1} parent=1 // pred_check_branch
      %74 = sbr.rel (0) target = $region49
    $region48: #{tpu_custom_call.1} parent=1 // pred_region
      _
    $region49: #{tpu_custom_call.1} parent=1 // pred_fallthru
      _
    // Predicated region
    $region50: #{tpu_custom_call.1} parent=1 // pred_check
      _
    $region51: #{tpu_custom_call.1} parent=1 // pred_check_branch
      %76 = sbr.rel (0) target = $region53
    $region52: #{tpu_custom_call.1} parent=1 // pred_region
      _
    $region53: #{tpu_custom_call.1} parent=1 // pred_fallthru
      _
    // Predicated region
    $region54: #{tpu_custom_call.1} parent=1 // pred_check
      _
    $region55: #{tpu_custom_call.1} parent=1 // pred_check_branch
      %78 = sbr.rel (0) target = $region57
    $region56: #{tpu_custom_call.1} parent=1 // pred_region
      _
    $region57: #{tpu_custom_call.1} parent=1 // pred_fallthru
      _
    // Predicated region
    $region58: #{tpu_custom_call.1} parent=1 // pred_check
      _
    $region59: #{tpu_custom_call.1} parent=1 // pred_check_branch
      %80 = sbr.rel (0) target = $region61
    $region60: #{tpu_custom_call.1} parent=1 // pred_region
      %s82 = ssub.s32 512, 512
      %83 = vsyncadd [#allocation12], %s82
      %s84 = sshll.u32 [#allocation11], 4
      %s85 = int_to_ptr.vmem [resolvable:$true] %s84
      %90 = dma.hbm_to_vmem [thread:$0]  %s14, 512, %s85, [#allocation12], 128, 128, 8
    $region61: #{tpu_custom_call.1} parent=1 // pred_fallthru
      _
    // Predicated region
    $region62: #{tpu_custom_call.1} parent=1 // pred_check
      _
    $region63: #{tpu_custom_call.1} parent=1 // pred_check_branch
      %92 = sbr.rel (0) target = $region65
    $region64: #{tpu_custom_call.1} parent=1 // pred_region
      _
    $region65: #{tpu_custom_call.1} parent=1 // pred_fallthru
      _
    // Predicated region
    $region66: #{tpu_custom_call.1} parent=1 // pred_check
      _
    $region67: #{tpu_custom_call.1} parent=1 // pred_check_branch
      %94 = sbr.rel (0) target = $region69
    $region68: #{tpu_custom_call.1} parent=1 // pred_region
      %s96 = ssub.s32 512, 512
      %97 = vsyncadd [#allocation12], %s96
      %s98 = sshll.u32 [#allocation13], 4
      %s99 = int_to_ptr.vmem [resolvable:$true] %s98
      %104 = dma.hbm_to_vmem [thread:$0]  %s16, 512, %s99, [#allocation12], 128, 128, 8
    $region69: #{tpu_custom_call.1} parent=1 // pred_fallthru
      _
    // Predicated region
    $region70: #{tpu_custom_call.1} parent=1 // pred_check
      _
    $region71: #{tpu_custom_call.1} parent=1 // pred_check_branch
      %106 = sbr.rel (0) target = $region73
    $region72: #{tpu_custom_call.1} parent=1 // pred_region
      _
    $region73: #{tpu_custom_call.1} parent=1 // pred_fallthru
      _
    // Predicated region
    $region74: #{tpu_custom_call.1} parent=1 // pred_check
      _
    $region75: #{tpu_custom_call.1} parent=1 // pred_check_branch
      %108 = sbr.rel (0) target = $region77
    $region76: #{tpu_custom_call.1} parent=1 // pred_region
      %109 = dma.done [#allocation6], 16
    $region77: #{tpu_custom_call.1} parent=1 // pred_fallthru
      _
    // Predicated region
    $region78: #{tpu_custom_call.1} parent=1 // pred_check
      _
    $region79: #{tpu_custom_call.1} parent=1 // pred_check_branch
      %111 = sbr.rel (0) target = $region81
    $region80: #{tpu_custom_call.1} parent=1 // pred_region
      %112 = dma.done [#allocation9], 16
    $region81: #{tpu_custom_call.1} parent=1 // pred_fallthru
      _
    // Predicated region
    $region82: #{tpu_custom_call.1} parent=1 // pred_check
      _
    $region83: #{tpu_custom_call.1} parent=1 // pred_check_branch
      %114 = sbr.rel (0) target = $region85
    $region84: #{tpu_custom_call.1} parent=1 // pred_region
      %115 = dma.done [#allocation9], 16
    $region85: #{tpu_custom_call.1} parent=1 // pred_fallthru
      _
    // Predicated region
    $region86: #{tpu_custom_call.1} parent=1 // pred_check
      _
    $region87: #{tpu_custom_call.1} parent=1 // pred_check_branch
      %117 = sbr.rel (0) target = $region89
    $region88: #{tpu_custom_call.1} parent=1 // pred_region
      %118 = dma.done [#allocation12], 512
    $region89: #{tpu_custom_call.1} parent=1 // pred_fallthru
      _
    // Predicated region
    $region90: #{tpu_custom_call.1} parent=1 // pred_check
      _
    $region91: #{tpu_custom_call.1} parent=1 // pred_check_branch
      %120 = sbr.rel (0) target = $region93
    $region92: #{tpu_custom_call.1} parent=1 // pred_region
      %121 = dma.done [#allocation12], 512
    $region93: #{tpu_custom_call.1} parent=1 // pred_fallthru
      _
    %v122 = vld [vmem:[%s0] sm:$0xff]
    %v123 = vld [vmem:[%s0 + $0x8] sm:$0xff]
    %v124 = vld [vmem:[%s0 + $0x10] sm:$0xff]
    %v125 = vld [vmem:[%s0 + $0x18] sm:$0xff]
    %v126 = vld [vmem:[%s0 + $0x20] sm:$0xff]
    %v127 = vld [vmem:[%s0 + $0x28] sm:$0xff]
    %v128 = vld [vmem:[%s0 + $0x30] sm:$0xff]
    %v129 = vld [vmem:[%s0 + $0x38] sm:$0xff]
    %v130 = vld [vmem:[%s1] sm:$0xff]
    %v131 = vld [vmem:[%s1 + $0x8] sm:$0xff]
    %v132 = vld [vmem:[%s1 + $0x10] sm:$0xff]
    %v133 = vld [vmem:[%s1 + $0x18] sm:$0xff]
    %v134 = vld [vmem:[%s1 + $0x20] sm:$0xff]
    %v135 = vld [vmem:[%s1 + $0x28] sm:$0xff]
    %v136 = vld [vmem:[%s1 + $0x30] sm:$0xff]
    %v137 = vld [vmem:[%s1 + $0x38] sm:$0xff]
    %v138 = vld [vmem:[%s3] sm:$0x3]
    %v140 = vlaneseq
    %v141 = vshrl.u32 %v140, 7
    %v142 = vsub.s32 0, %v141
    %v143 = vrot.slane %v138, %v142
    %v144 = vlaneseq
    %v145 = vshrl.u32 %v144, 7
    %v146 = vsub.s32 1, %v145
    %v147 = vrot.slane %v138, %v146
    %vm150 = vcmask 261120
    %v152 = vsel %vm150, %v122, 0
    %v155 = vsel %vm150, %v123, 0
    %v158 = vsel %vm150, %v124, 0
    %v161 = vsel %vm150, %v125, 0
    %v164 = vsel %vm150, %v126, 0
    %v167 = vsel %vm150, %v127, 0
    %v170 = vsel %vm150, %v128, 0
    %v173 = vsel %vm150, %v129, 0
    %175 = vmatprep.subr.mxu0 %v131
    %176 = vmatpush1.msra.mxu0 %v130
    %177 = vmatprep.subr.mxu0 %v133
    %178 = vmatpush1.msra.mxu0 %v132
    %179 = vmatprep.subr.mxu0 %v135
    %180 = vmatpush1.msra.mxu0 %v134
    %181 = vmatprep.subr.mxu0 %v137
    %182 = vmatpush1.msra.mxu0 %v136
    %183 = vmatprep.subr.mxu0 0.0
    %184 = vmatpush1.msra.mxu0 0.0
    %185 = vmatprep.subr.mxu0 0.0
    %186 = vmatpush1.msra.mxu0 0.0
    %187 = vmatprep.subr.mxu0 0.0
    %188 = vmatpush1.msra.mxu0 0.0
    %189 = vmatprep.subr.mxu0 0.0
    %190 = vmatpush1.msra.mxu0 0.0
    %191 = vmatprep.subr.mxu0 0.0
    %192 = vmatpush1.msra.mxu0 0.0
    %193 = vmatprep.subr.mxu0 0.0
    %194 = vmatpush1.msra.mxu0 0.0
    %195 = vmatprep.subr.mxu0 0.0
    %196 = vmatpush1.msra.mxu0 0.0
    %197 = vmatprep.subr.mxu0 0.0
    %198 = vmatpush1.msra.mxu0 0.0
    %199 = vmatprep.subr.mxu0 0.0
    %200 = vmatpush1.msra.mxu0 0.0
    %201 = vmatprep.subr.mxu0 0.0
    %202 = vmatpush1.msra.mxu0 0.0
    %203 = vmatprep.subr.mxu0 0.0
    %204 = vmatpush1.msra.mxu0 0.0
    %205 = vmatprep.subr.mxu0 0.0
    %206 = vmatpush1.msra.mxu0 0.0
    %207 = vmatprep.subr.mxu0 0.0
    %208 = vmatpush1.msra.mxu0 0.0
    %209 = vmatprep.subr.mxu0 0.0
    %210 = vmatpush1.msra.mxu0 0.0
    %211 = vmatprep.subr.mxu0 0.0
    %212 = vmatpush1.msra.mxu0 0.0
    %213 = vmatprep.subr.mxu0 0.0
    %214 = vmatpush1.msra.mxu0 0.0
    %215 = vmatprep.subr.mxu0 0.0
    %216 = vmatpush1.msra.mxu0 0.0
    %217 = vmatprep.subr.mxu0 0.0
    %218 = vmatpush1.msra.mxu0 0.0
    %219 = vmatprep.subr.mxu0 0.0
    %220 = vmatpush1.msra.mxu0 0.0
    %221 = vmatprep.subr.mxu0 0.0
    %222 = vmatpush1.msra.mxu0 0.0
    %223 = vmatprep.subr.mxu0 0.0
    %224 = vmatpush1.msra.mxu0 0.0
    %225 = vmatprep.subr.mxu0 0.0
    %226 = vmatpush1.msra.mxu0 0.0
    %227 = vmatprep.subr.mxu0 0.0
    %228 = vmatpush1.msra.mxu0 0.0
    %229 = vmatprep.subr.mxu0 0.0
    %230 = vmatpush1.msra.mxu0 0.0
    %231 = vmatprep.subr.mxu0 0.0
    %232 = vmatpush1.msra.mxu0 0.0
    %233 = vmatprep.subr.mxu0 0.0
    %234 = vmatpush1.msra.mxu0 0.0
    %235 = vmatprep.subr.mxu0 0.0
    %236 = vmatpush1.msra.mxu0 0.0
    %237 = vmatprep.subr.mxu0 0.0
    %238 = vmatpush1.msra.mxu0 0.0
    %239 = vmatprep.mubr.f32.mxu0 0.0
    %240 = vmatmul.mubr.f32.gmra.mrb[0].mxu0 %v152
    %v241 = vpop.f32.mrb[0].mxu0
    %v242 = vadd.f32 %v143, %v241
    %v243 = vpop.f32.mrb[0].mxu0
    %v244 = vadd.f32 %v147, %v243
    %245 = vmatprep.mubr.f32.mxu0 0.0
    %246 = vmatmul.mubr.f32.gmra.mrb[0].mxu0 %v155
    %v247 = vpop.f32.mrb[0].mxu0
    %v248 = vadd.f32 %v143, %v247
    %v249 = vpop.f32.mrb[0].mxu0
    %v250 = vadd.f32 %v147, %v249
    %251 = vmatprep.mubr.f32.mxu0 0.0
    %252 = vmatmul.mubr.f32.gmra.mrb[0].mxu0 %v158
    %v253 = vpop.f32.mrb[0].mxu0
    %v254 = vadd.f32 %v143, %v253
    %v255 = vpop.f32.mrb[0].mxu0
    %v256 = vadd.f32 %v147, %v255
    %257 = vmatprep.mubr.f32.mxu0 0.0
    %258 = vmatmul.mubr.f32.gmra.mrb[0].mxu0 %v161
    %v259 = vpop.f32.mrb[0].mxu0
    %v260 = vadd.f32 %v143, %v259
    %v261 = vpop.f32.mrb[0].mxu0
    %v262 = vadd.f32 %v147, %v261
    %263 = vmatprep.mubr.f32.mxu0 0.0
    %264 = vmatmul.mubr.f32.gmra.mrb[0].mxu0 %v164
    %v265 = vpop.f32.mrb[0].mxu0
    %v266 = vadd.f32 %v143, %v265
    %v267 = vpop.f32.mrb[0].mxu0
    %v268 = vadd.f32 %v147, %v267
    %269 = vmatprep.mubr.f32.mxu0 0.0
    %270 = vmatmul.mubr.f32.gmra.mrb[0].mxu0 %v167
    %v271 = vpop.f32.mrb[0].mxu0
    %v272 = vadd.f32 %v143, %v271
    %v273 = vpop.f32.mrb[0].mxu0
    %v274 = vadd.f32 %v147, %v273
    %275 = vmatprep.mubr.f32.mxu0 0.0
    %276 = vmatmul.mubr.f32.gmra.mrb[0].mxu0 %v170
    %v277 = vpop.f32.mrb[0].mxu0
    %v278 = vadd.f32 %v143, %v277
    %v279 = vpop.f32.mrb[0].mxu0
    %v280 = vadd.f32 %v147, %v279
    %281 = vmatprep.mubr.f32.mxu0 0.0
    %282 = vmatmul.mubr.f32.gmra.mrb[0].mxu0 %v173
    %v283 = vpop.f32.mrb[0].mxu0
    %v284 = vadd.f32 %v143, %v283
    %v285 = vpop.f32.mrb[0].mxu0
    %v286 = vadd.f32 %v147, %v285
    %287 = vdwg.mxu0
    %288 = vst [vmem:[#allocation2] sm:$0xff] %v242
    %289 = vst [vmem:[#allocation2 + $0x8] sm:$0xff] %v244
    %290 = vst [vmem:[#allocation2 + $0x10] sm:$0xff] %v248
    %291 = vst [vmem:[#allocation2 + $0x18] sm:$0xff] %v250
    %292 = vst [vmem:[#allocation2 + $0x20] sm:$0xff] %v254
    %293 = vst [vmem:[#allocation2 + $0x28] sm:$0xff] %v256
    %294 = vst [vmem:[#allocation2 + $0x30] sm:$0xff] %v260
    %295 = vst [vmem:[#allocation2 + $0x38] sm:$0xff] %v262
    %296 = vst [vmem:[#allocation2 + $0x40] sm:$0xff] %v266
    %297 = vst [vmem:[#allocation2 + $0x48] sm:$0xff] %v268
    %298 = vst [vmem:[#allocation2 + $0x50] sm:$0xff] %v272
    %299 = vst [vmem:[#allocation2 + $0x58] sm:$0xff] %v274
    %300 = vst [vmem:[#allocation2 + $0x60] sm:$0xff] %v278
    %301 = vst [vmem:[#allocation2 + $0x68] sm:$0xff] %v280
    %302 = vst [vmem:[#allocation2 + $0x70] sm:$0xff] %v284
    %303 = vst [vmem:[#allocation2 + $0x78] sm:$0xff] %v286
    loop: start=0, step=1, limit=8
    $region94: #{tpu_custom_call.1} parent=1 // loop_pre_header
      _
    $region95: #{tpu_custom_call.1} parent=1 // loop_header
      %s305 = sphi 0, %s309
      %p306 = scmp.ge.s32.totalorder %s305, 8
      %v310 = vphi 0.0, %v513
      %v311 = vphi 0.0, %v507
      %v312 = vphi 0.0, %v537
      %v313 = vphi 0.0, %v531
    $region96: #{tpu_custom_call.1} parent=1 // loop_header_branch
      %308 = sbr.rel (%p306) target = $region100
    $region97: #{tpu_custom_call.1} parent=1 // loop_body
      %s314 = ssub.s32 7, %s305
      %s315 = smul.u32 %s305, 8
      %s316 = smul.u32 %s314, 8
      %s317 = sshra.s32 %s315, 3
      %s318 = sand.u32 %s315, 7
      %s319 = smul.u32 %s317, 2
      %s320 = smul.addr %s319, 8
      %s321 = scalar_lea.vmem [#allocation2], %s320
      %v322 = vld [vmem:[%s321] sm:$0xff]
      %v323 = vld [vmem:[%s2] sm:$0xff]
      %v324 = vld [vmem:[%s2 + $0x8] sm:$0xff]
      %v325 = vld [vmem:[%s2 + $0x10] sm:$0xff]
      %v326 = vld [vmem:[%s2 + $0x18] sm:$0xff]
      %328 = vrot.lane.b32.xlu0 %v310, 32
      %v329 = vpop.permute.xlu0 %328
      %v330 = vsel %vm150, %v329, 0
      %332 = vmatprep.subr.mxu0 0.0
      %333 = vmatpush1.msra.mxu0 %v323
      %334 = vmatprep.subr.mxu0 0.0
      %335 = vmatpush1.msra.mxu0 %v324
      %336 = vmatprep.subr.mxu0 0.0
      %337 = vmatpush1.msra.mxu0 %v325
      %338 = vmatprep.subr.mxu0 0.0
      %339 = vmatpush1.msra.mxu0 %v326
      %340 = vmatprep.subr.mxu0 0.0
      %341 = vmatpush1.msra.mxu0 0.0
      %342 = vmatprep.subr.mxu0 0.0
      %343 = vmatpush1.msra.mxu0 0.0
      %344 = vmatprep.subr.mxu0 0.0
      %345 = vmatpush1.msra.mxu0 0.0
      %346 = vmatprep.subr.mxu0 0.0
      %347 = vmatpush1.msra.mxu0 0.0
      %348 = vmatprep.subr.mxu0 0.0
      %349 = vmatpush1.msra.mxu0 0.0
      %350 = vmatprep.subr.mxu0 0.0
      %351 = vmatpush1.msra.mxu0 0.0
      %352 = vmatprep.subr.mxu0 0.0
      %353 = vmatpush1.msra.mxu0 0.0
      %354 = vmatprep.subr.mxu0 0.0
      %355 = vmatpush1.msra.mxu0 0.0
      %356 = vmatprep.subr.mxu0 0.0
      %357 = vmatpush1.msra.mxu0 0.0
      %358 = vmatprep.subr.mxu0 0.0
      %359 = vmatpush1.msra.mxu0 0.0
      %360 = vmatprep.subr.mxu0 0.0
      %361 = vmatpush1.msra.mxu0 0.0
      %362 = vmatprep.subr.mxu0 0.0
      %363 = vmatpush1.msra.mxu0 0.0
      %364 = vmatprep.subr.mxu0 0.0
      %365 = vmatpush1.msra.mxu0 0.0
      %366 = vmatprep.subr.mxu0 0.0
      %367 = vmatpush1.msra.mxu0 0.0
      %368 = vmatprep.subr.mxu0 0.0
      %369 = vmatpush1.msra.mxu0 0.0
      %370 = vmatprep.subr.mxu0 0.0
      %371 = vmatpush1.msra.mxu0 0.0
      %372 = vmatprep.subr.mxu0 0.0
      %373 = vmatpush1.msra.mxu0 0.0
      %374 = vmatprep.subr.mxu0 0.0
      %375 = vmatpush1.msra.mxu0 0.0
      %376 = vmatprep.subr.mxu0 0.0
      %377 = vmatpush1.msra.mxu0 0.0
      %378 = vmatprep.subr.mxu0 0.0
      %379 = vmatpush1.msra.mxu0 0.0
      %380 = vmatprep.subr.mxu0 0.0
      %381 = vmatpush1.msra.mxu0 0.0
      %382 = vmatprep.subr.mxu0 0.0
      %383 = vmatpush1.msra.mxu0 0.0
      %384 = vmatprep.subr.mxu0 0.0
      %385 = vmatpush1.msra.mxu0 0.0
      %386 = vmatprep.subr.mxu0 0.0
      %387 = vmatpush1.msra.mxu0 0.0
      %388 = vmatprep.subr.mxu0 0.0
      %389 = vmatpush1.msra.mxu0 0.0
      %390 = vmatprep.subr.mxu0 0.0
      %391 = vmatpush1.msra.mxu0 0.0
      %392 = vmatprep.subr.mxu0 0.0
      %393 = vmatpush1.msra.mxu0 0.0
      %394 = vmatprep.subr.mxu0 0.0
      %395 = vmatpush1.msra.mxu0 0.0
      %396 = vmatprep.mubr.f32.mxu0 0.0
      %397 = vmatmul.mubr.f32.gmra.mrb[0].mxu0 %v330
      %v398 = vpop.f32.mrb[0].mxu0
      %v399 = vadd.f32 0.0, %v398
      %v400 = vpop.f32.mrb[0].mxu0
      %401 = vdwg.mxu0
      %v402 = vadd.f32 %v322, %v399
      %s403 = sshra.s32 %s316, 3
      %s404 = sand.u32 %s316, 7
      %s405 = smul.u32 %s403, 2
      %s406 = smul.addr %s405, 8
      %s407 = scalar_lea.vmem [#allocation2], %s406
      %v408 = vld [vmem:[%s407 + $0x8] sm:$0xff]
      %s409 = scalar_lea.vmem %s2, 32
      %v410 = vld [vmem:[%s409] sm:$0xff]
      %v411 = vld [vmem:[%s409 + $0x8] sm:$0xff]
      %v412 = vld [vmem:[%s409 + $0x10] sm:$0xff]
      %v413 = vld [vmem:[%s409 + $0x18] sm:$0xff]
      %415 = vrot.lane.b32.xlu0 %v312, 32
      %v416 = vpop.permute.xlu0 %415
      %v417 = vsel %vm150, %v416, 0
      %419 = vmatprep.subr.mxu0 0.0
      %420 = vmatpush1.msra.mxu0 %v410
      %421 = vmatprep.subr.mxu0 0.0
      %422 = vmatpush1.msra.mxu0 %v411
      %423 = vmatprep.subr.mxu0 0.0
      %424 = vmatpush1.msra.mxu0 %v412
      %425 = vmatprep.subr.mxu0 0.0
      %426 = vmatpush1.msra.mxu0 %v413
      %427 = vmatprep.subr.mxu0 0.0
      %428 = vmatpush1.msra.mxu0 0.0
      %429 = vmatprep.subr.mxu0 0.0
      %430 = vmatpush1.msra.mxu0 0.0
      %431 = vmatprep.subr.mxu0 0.0
      %432 = vmatpush1.msra.mxu0 0.0
      %433 = vmatprep.subr.mxu0 0.0
      %434 = vmatpush1.msra.mxu0 0.0
      %435 = vmatprep.subr.mxu0 0.0
      %436 = vmatpush1.msra.mxu0 0.0
      %437 = vmatprep.subr.mxu0 0.0
      %438 = vmatpush1.msra.mxu0 0.0
      %439 = vmatprep.subr.mxu0 0.0
      %440 = vmatpush1.msra.mxu0 0.0
      %441 = vmatprep.subr.mxu0 0.0
      %442 = vmatpush1.msra.mxu0 0.0
      %443 = vmatprep.subr.mxu0 0.0
      %444 = vmatpush1.msra.mxu0 0.0
      %445 = vmatprep.subr.mxu0 0.0
      %446 = vmatpush1.msra.mxu0 0.0
      %447 = vmatprep.subr.mxu0 0.0
      %448 = vmatpush1.msra.mxu0 0.0
      %449 = vmatprep.subr.mxu0 0.0
      %450 = vmatpush1.msra.mxu0 0.0
      %451 = vmatprep.subr.mxu0 0.0
      %452 = vmatpush1.msra.mxu0 0.0
      %453 = vmatprep.subr.mxu0 0.0
      %454 = vmatpush1.msra.mxu0 0.0
      %455 = vmatprep.subr.mxu0 0.0
      %456 = vmatpush1.msra.mxu0 0.0
      %457 = vmatprep.subr.mxu0 0.0
      %458 = vmatpush1.msra.mxu0 0.0
      %459 = vmatprep.subr.mxu0 0.0
      %460 = vmatpush1.msra.mxu0 0.0
      %461 = vmatprep.subr.mxu0 0.0
      %462 = vmatpush1.msra.mxu0 0.0
      %463 = vmatprep.subr.mxu0 0.0
      %464 = vmatpush1.msra.mxu0 0.0
      %465 = vmatprep.subr.mxu0 0.0
      %466 = vmatpush1.msra.mxu0 0.0
      %467 = vmatprep.subr.mxu0 0.0
      %468 = vmatpush1.msra.mxu0 0.0
      %469 = vmatprep.subr.mxu0 0.0
      %470 = vmatpush1.msra.mxu0 0.0
      %471 = vmatprep.subr.mxu0 0.0
      %472 = vmatpush1.msra.mxu0 0.0
      %473 = vmatprep.subr.mxu0 0.0
      %474 = vmatpush1.msra.mxu0 0.0
      %475 = vmatprep.subr.mxu0 0.0
      %476 = vmatpush1.msra.mxu0 0.0
      %477 = vmatprep.subr.mxu0 0.0
      %478 = vmatpush1.msra.mxu0 0.0
      %479 = vmatprep.subr.mxu0 0.0
      %480 = vmatpush1.msra.mxu0 0.0
      %481 = vmatprep.subr.mxu0 0.0
      %482 = vmatpush1.msra.mxu0 0.0
      %483 = vmatprep.mubr.f32.mxu0 0.0
      %484 = vmatmul.mubr.f32.gmra.mrb[0].mxu0 %v417
      %v485 = vpop.f32.mrb[0].mxu0
      %v486 = vadd.f32 0.0, %v485
      %v487 = vpop.f32.mrb[0].mxu0
      %488 = vdwg.mxu0
      %v489 = vadd.f32 %v408, %v486
      %v490 = vxor.u32 %v402, 2147483648
      %v491 = vmul.f32 %v490, 1.442695
      %v492 = vpow.pop %v491
      %v493 = vadd.f32 %v492, 1.0
      %v494 = vrcp.pop %v493
      %v495 = vmul.f32 1.0, %v494
      %v496 = vtanh.pop %v402
      %v497 = vmul.f32 %v495, %v311
      %499 = vrot.lane.b32.xlu0 %v496, 64
      %v500 = vpop.permute.xlu0 %499
      %v502 = vmul.f32 %v495, %v500
      %504 = vrot.lane.b32.xlu0 %v502, 32
      %v505 = vpop.permute.xlu0 %504
      %v507 = vadd.f32 %v497, %v505
      %v508 = vtanh.pop %v507
      %510 = vrot.lane.b32.xlu0 %v508, 64
      %v511 = vpop.permute.xlu0 %510
      %v513 = vmul.f32 %v495, %v511
      %v514 = vxor.u32 %v489, 2147483648
      %v515 = vmul.f32 %v514, 1.442695
      %v516 = vpow.pop %v515
      %v517 = vadd.f32 %v516, 1.0
      %v518 = vrcp.pop %v517
      %v519 = vmul.f32 1.0, %v518
      %v520 = vtanh.pop %v489
      %v521 = vmul.f32 %v519, %v313
      %523 = vrot.lane.b32.xlu0 %v520, 64
      %v524 = vpop.permute.xlu0 %523
      %v526 = vmul.f32 %v519, %v524
      %528 = vrot.lane.b32.xlu0 %v526, 32
      %v529 = vpop.permute.xlu0 %528
      %v531 = vadd.f32 %v521, %v529
      %v532 = vtanh.pop %v531
      %534 = vrot.lane.b32.xlu0 %v532, 64
      %v535 = vpop.permute.xlu0 %534
      %v537 = vmul.f32 %v519, %v535
      %539 = vrot.lane.b32.xlu0 %v513, 32
      %v540 = vpop.permute.xlu0 %539
      %s542 = scalar_lea.vmem [#allocation3], %s315
      %543 = vst.msk [vmem:[%s542] sm:$0xff] %vm150, %v540
      %545 = vrot.lane.b32.xlu0 %v537, 32
      %v546 = vpop.permute.xlu0 %545
      %s548 = scalar_lea.vmem [#allocation4], %s316
      %549 = vst.msk [vmem:[%s548] sm:$0xff] %vm150, %v546
    $region98: #{tpu_custom_call.1} parent=1 // loop_footer
      %s309 = sadd.s32 1, %s305
    $region99: #{tpu_custom_call.1} parent=1 // loop_footer_branch
      %304 = sbr.rel target = $region95
    $region100: #{tpu_custom_call.1} parent=1 // loop_exit
      _
    %v550 = vld [vmem:[%s0] sm:$0xff]
    %v551 = vld [vmem:[%s0 + $0x8] sm:$0xff]
    %v552 = vld [vmem:[%s0 + $0x10] sm:$0xff]
    %v553 = vld [vmem:[%s0 + $0x18] sm:$0xff]
    %v554 = vld [vmem:[%s0 + $0x20] sm:$0xff]
    %v555 = vld [vmem:[%s0 + $0x28] sm:$0xff]
    %v556 = vld [vmem:[%s0 + $0x30] sm:$0xff]
    %v557 = vld [vmem:[%s0 + $0x38] sm:$0xff]
    %v558 = vld [vmem:[#allocation3] sm:$0xff]
    %v559 = vld [vmem:[#allocation3 + $0x8] sm:$0xff]
    %v560 = vld [vmem:[#allocation3 + $0x10] sm:$0xff]
    %v561 = vld [vmem:[#allocation3 + $0x18] sm:$0xff]
    %v562 = vld [vmem:[#allocation3 + $0x20] sm:$0xff]
    %v563 = vld [vmem:[#allocation3 + $0x28] sm:$0xff]
    %v564 = vld [vmem:[#allocation3 + $0x30] sm:$0xff]
    %v565 = vld [vmem:[#allocation3 + $0x38] sm:$0xff]
    %v566 = vld [vmem:[%s4] sm:$0xff]
    %v567 = vld [vmem:[%s4 + $0x8] sm:$0xff]
    %v568 = vld [vmem:[%s4 + $0x10] sm:$0xff]
    %v569 = vld [vmem:[%s4 + $0x18] sm:$0xff]
    %v570 = vld [vmem:[#allocation4] sm:$0xff]
    %v571 = vld [vmem:[#allocation4 + $0x8] sm:$0xff]
    %v572 = vld [vmem:[#allocation4 + $0x10] sm:$0xff]
    %v573 = vld [vmem:[#allocation4 + $0x18] sm:$0xff]
    %v574 = vld [vmem:[#allocation4 + $0x20] sm:$0xff]
    %v575 = vld [vmem:[#allocation4 + $0x28] sm:$0xff]
    %v576 = vld [vmem:[#allocation4 + $0x30] sm:$0xff]
    %v577 = vld [vmem:[#allocation4 + $0x38] sm:$0xff]
    %v578 = vld [vmem:[%s5] sm:$0xff]
    %v579 = vld [vmem:[%s5 + $0x8] sm:$0xff]
    %v580 = vld [vmem:[%s5 + $0x10] sm:$0xff]
    %v581 = vld [vmem:[%s5 + $0x18] sm:$0xff]
    %v583 = vsel %vm150, %v570, 0
    %v586 = vsel %vm150, %v571, 0
    %v589 = vsel %vm150, %v572, 0
    %v592 = vsel %vm150, %v573, 0
    %v595 = vsel %vm150, %v574, 0
    %v598 = vsel %vm150, %v575, 0
    %v601 = vsel %vm150, %v576, 0
    %v604 = vsel %vm150, %v577, 0
    %606 = vmatprep.subr.mxu0 0.0
    %607 = vmatpush1.msra.mxu0 %v578
    %608 = vmatprep.subr.mxu0 0.0
    %609 = vmatpush1.msra.mxu0 %v579
    %610 = vmatprep.subr.mxu0 0.0
    %611 = vmatpush1.msra.mxu0 %v580
    %612 = vmatprep.subr.mxu0 0.0
    %613 = vmatpush1.msra.mxu0 %v581
    %614 = vmatprep.subr.mxu0 0.0
    %615 = vmatpush1.msra.mxu0 0.0
    %616 = vmatprep.subr.mxu0 0.0
    %617 = vmatpush1.msra.mxu0 0.0
    %618 = vmatprep.subr.mxu0 0.0
    %619 = vmatpush1.msra.mxu0 0.0
    %620 = vmatprep.subr.mxu0 0.0
    %621 = vmatpush1.msra.mxu0 0.0
    %622 = vmatprep.subr.mxu0 0.0
    %623 = vmatpush1.msra.mxu0 0.0
    %624 = vmatprep.subr.mxu0 0.0
    %625 = vmatpush1.msra.mxu0 0.0
    %626 = vmatprep.subr.mxu0 0.0
    %627 = vmatpush1.msra.mxu0 0.0
    %628 = vmatprep.subr.mxu0 0.0
    %629 = vmatpush1.msra.mxu0 0.0
    %630 = vmatprep.subr.mxu0 0.0
    %631 = vmatpush1.msra.mxu0 0.0
    %632 = vmatprep.subr.mxu0 0.0
    %633 = vmatpush1.msra.mxu0 0.0
    %634 = vmatprep.subr.mxu0 0.0
    %635 = vmatpush1.msra.mxu0 0.0
    %636 = vmatprep.subr.mxu0 0.0
    %637 = vmatpush1.msra.mxu0 0.0
    %638 = vmatprep.subr.mxu0 0.0
    %639 = vmatpush1.msra.mxu0 0.0
    %640 = vmatprep.subr.mxu0 0.0
    %641 = vmatpush1.msra.mxu0 0.0
    %642 = vmatprep.subr.mxu0 0.0
    %643 = vmatpush1.msra.mxu0 0.0
    %644 = vmatprep.subr.mxu0 0.0
    %645 = vmatpush1.msra.mxu0 0.0
    %646 = vmatprep.subr.mxu0 0.0
    %647 = vmatpush1.msra.mxu0 0.0
    %648 = vmatprep.subr.mxu0 0.0
    %649 = vmatpush1.msra.mxu0 0.0
    %650 = vmatprep.subr.mxu0 0.0
    %651 = vmatpush1.msra.mxu0 0.0
    %652 = vmatprep.subr.mxu0 0.0
    %653 = vmatpush1.msra.mxu0 0.0
    %654 = vmatprep.subr.mxu0 0.0
    %655 = vmatpush1.msra.mxu0 0.0
    %656 = vmatprep.subr.mxu0 0.0
    %657 = vmatpush1.msra.mxu0 0.0
    %658 = vmatprep.subr.mxu0 0.0
    %659 = vmatpush1.msra.mxu0 0.0
    %660 = vmatprep.subr.mxu0 0.0
    %661 = vmatpush1.msra.mxu0 0.0
    %662 = vmatprep.subr.mxu0 0.0
    %663 = vmatpush1.msra.mxu0 0.0
    %664 = vmatprep.subr.mxu0 0.0
    %665 = vmatpush1.msra.mxu0 0.0
    %666 = vmatprep.subr.mxu0 0.0
    %667 = vmatpush1.msra.mxu0 0.0
    %668 = vmatprep.subr.mxu0 0.0
    %669 = vmatpush1.msra.mxu0 0.0
    %670 = vmatprep.mubr.f32.mxu0 0.0
    %671 = vmatmul.mubr.f32.gmra.mrb[0].mxu0 %v583
    %v672 = vpop.f32.mrb[0].mxu0
    %v673 = vadd.f32 0.0, %v672
    %v674 = vpop.f32.mrb[0].mxu0
    %675 = vmatprep.mubr.f32.mxu0 0.0
    %676 = vmatmul.mubr.f32.gmra.mrb[0].mxu0 %v586
    %v677 = vpop.f32.mrb[0].mxu0
    %v678 = vadd.f32 0.0, %v677
    %v679 = vpop.f32.mrb[0].mxu0
    %680 = vmatprep.mubr.f32.mxu0 0.0
    %681 = vmatmul.mubr.f32.gmra.mrb[0].mxu0 %v589
    %v682 = vpop.f32.mrb[0].mxu0
    %v683 = vadd.f32 0.0, %v682
    %v684 = vpop.f32.mrb[0].mxu0
    %685 = vmatprep.mubr.f32.mxu0 0.0
    %686 = vmatmul.mubr.f32.gmra.mrb[0].mxu0 %v592
    %v687 = vpop.f32.mrb[0].mxu0
    %v688 = vadd.f32 0.0, %v687
    %v689 = vpop.f32.mrb[0].mxu0
    %690 = vmatprep.mubr.f32.mxu0 0.0
    %691 = vmatmul.mubr.f32.gmra.mrb[0].mxu0 %v595
    %v692 = vpop.f32.mrb[0].mxu0
    %v693 = vadd.f32 0.0, %v692
    %v694 = vpop.f32.mrb[0].mxu0
    %695 = vmatprep.mubr.f32.mxu0 0.0
    %696 = vmatmul.mubr.f32.gmra.mrb[0].mxu0 %v598
    %v697 = vpop.f32.mrb[0].mxu0
    %v698 = vadd.f32 0.0, %v697
    %v699 = vpop.f32.mrb[0].mxu0
    %700 = vmatprep.mubr.f32.mxu0 0.0
    %701 = vmatmul.mubr.f32.gmra.mrb[0].mxu0 %v601
    %v702 = vpop.f32.mrb[0].mxu0
    %v703 = vadd.f32 0.0, %v702
    %v704 = vpop.f32.mrb[0].mxu0
    %705 = vmatprep.mubr.f32.mxu0 0.0
    %706 = vmatmul.mubr.f32.gmra.mrb[0].mxu0 %v604
    %v707 = vpop.f32.mrb[0].mxu0
    %v708 = vadd.f32 0.0, %v707
    %v709 = vpop.f32.mrb[0].mxu0
    %710 = vdwg.mxu0
    %v712 = vsel %vm150, %v558, 0
    %v715 = vsel %vm150, %v559, 0
    %v718 = vsel %vm150, %v560, 0
    %v721 = vsel %vm150, %v561, 0
    %v724 = vsel %vm150, %v562, 0
    %v727 = vsel %vm150, %v563, 0
    %v730 = vsel %vm150, %v564, 0
    %v733 = vsel %vm150, %v565, 0
    %735 = vmatprep.subr.mxu0 0.0
    %736 = vmatpush1.msra.mxu0 %v566
    %737 = vmatprep.subr.mxu0 0.0
    %738 = vmatpush1.msra.mxu0 %v567
    %739 = vmatprep.subr.mxu0 0.0
    %740 = vmatpush1.msra.mxu0 %v568
    %741 = vmatprep.subr.mxu0 0.0
    %742 = vmatpush1.msra.mxu0 %v569
    %743 = vmatprep.subr.mxu0 0.0
    %744 = vmatpush1.msra.mxu0 0.0
    %745 = vmatprep.subr.mxu0 0.0
    %746 = vmatpush1.msra.mxu0 0.0
    %747 = vmatprep.subr.mxu0 0.0
    %748 = vmatpush1.msra.mxu0 0.0
    %749 = vmatprep.subr.mxu0 0.0
    %750 = vmatpush1.msra.mxu0 0.0
    %751 = vmatprep.subr.mxu0 0.0
    %752 = vmatpush1.msra.mxu0 0.0
    %753 = vmatprep.subr.mxu0 0.0
    %754 = vmatpush1.msra.mxu0 0.0
    %755 = vmatprep.subr.mxu0 0.0
    %756 = vmatpush1.msra.mxu0 0.0
    %757 = vmatprep.subr.mxu0 0.0
    %758 = vmatpush1.msra.mxu0 0.0
    %759 = vmatprep.subr.mxu0 0.0
    %760 = vmatpush1.msra.mxu0 0.0
    %761 = vmatprep.subr.mxu0 0.0
    %762 = vmatpush1.msra.mxu0 0.0
    %763 = vmatprep.subr.mxu0 0.0
    %764 = vmatpush1.msra.mxu0 0.0
    %765 = vmatprep.subr.mxu0 0.0
    %766 = vmatpush1.msra.mxu0 0.0
    %767 = vmatprep.subr.mxu0 0.0
    %768 = vmatpush1.msra.mxu0 0.0
    %769 = vmatprep.subr.mxu0 0.0
    %770 = vmatpush1.msra.mxu0 0.0
    %771 = vmatprep.subr.mxu0 0.0
    %772 = vmatpush1.msra.mxu0 0.0
    %773 = vmatprep.subr.mxu0 0.0
    %774 = vmatpush1.msra.mxu0 0.0
    %775 = vmatprep.subr.mxu0 0.0
    %776 = vmatpush1.msra.mxu0 0.0
    %777 = vmatprep.subr.mxu0 0.0
    %778 = vmatpush1.msra.mxu0 0.0
    %779 = vmatprep.subr.mxu0 0.0
    %780 = vmatpush1.msra.mxu0 0.0
    %781 = vmatprep.subr.mxu0 0.0
    %782 = vmatpush1.msra.mxu0 0.0
    %783 = vmatprep.subr.mxu0 0.0
    %784 = vmatpush1.msra.mxu0 0.0
    %785 = vmatprep.subr.mxu0 0.0
    %786 = vmatpush1.msra.mxu0 0.0
    %787 = vmatprep.subr.mxu0 0.0
    %788 = vmatpush1.msra.mxu0 0.0
    %789 = vmatprep.subr.mxu0 0.0
    %790 = vmatpush1.msra.mxu0 0.0
    %791 = vmatprep.subr.mxu0 0.0
    %792 = vmatpush1.msra.mxu0 0.0
    %793 = vmatprep.subr.mxu0 0.0
    %794 = vmatpush1.msra.mxu0 0.0
    %795 = vmatprep.subr.mxu0 0.0
    %796 = vmatpush1.msra.mxu0 0.0
    %797 = vmatprep.subr.mxu0 0.0
    %798 = vmatpush1.msra.mxu0 0.0
    %799 = vmatprep.mubr.f32.mxu0 0.0
    %800 = vmatmul.mubr.f32.gmra.mrb[0].mxu0 %v712
    %v801 = vpop.f32.mrb[0].mxu0
    %v802 = vadd.f32 %v673, %v801
    %v803 = vpop.f32.mrb[0].mxu0
    %804 = vmatprep.mubr.f32.mxu0 0.0
    %805 = vmatmul.mubr.f32.gmra.mrb[0].mxu0 %v715
    %v806 = vpop.f32.mrb[0].mxu0
    %v807 = vadd.f32 %v678, %v806
    %v808 = vpop.f32.mrb[0].mxu0
    %809 = vmatprep.mubr.f32.mxu0 0.0
    %810 = vmatmul.mubr.f32.gmra.mrb[0].mxu0 %v718
    %v811 = vpop.f32.mrb[0].mxu0
    %v812 = vadd.f32 %v683, %v811
    %v813 = vpop.f32.mrb[0].mxu0
    %814 = vmatprep.mubr.f32.mxu0 0.0
    %815 = vmatmul.mubr.f32.gmra.mrb[0].mxu0 %v721
    %v816 = vpop.f32.mrb[0].mxu0
    %v817 = vadd.f32 %v688, %v816
    %v818 = vpop.f32.mrb[0].mxu0
    %819 = vmatprep.mubr.f32.mxu0 0.0
    %820 = vmatmul.mubr.f32.gmra.mrb[0].mxu0 %v724
    %v821 = vpop.f32.mrb[0].mxu0
    %v822 = vadd.f32 %v693, %v821
    %v823 = vpop.f32.mrb[0].mxu0
    %824 = vmatprep.mubr.f32.mxu0 0.0
    %825 = vmatmul.mubr.f32.gmra.mrb[0].mxu0 %v727
    %v826 = vpop.f32.mrb[0].mxu0
    %v827 = vadd.f32 %v698, %v826
    %v828 = vpop.f32.mrb[0].mxu0
    %829 = vmatprep.mubr.f32.mxu0 0.0
    %830 = vmatmul.mubr.f32.gmra.mrb[0].mxu0 %v730
    %v831 = vpop.f32.mrb[0].mxu0
    %v832 = vadd.f32 %v703, %v831
    %v833 = vpop.f32.mrb[0].mxu0
    %834 = vmatprep.mubr.f32.mxu0 0.0
    %835 = vmatmul.mubr.f32.gmra.mrb[0].mxu0 %v733
    %v836 = vpop.f32.mrb[0].mxu0
    %v837 = vadd.f32 %v708, %v836
    %v838 = vpop.f32.mrb[0].mxu0
    %839 = vdwg.mxu0
    %v840 = vld [vmem:[#allocation5] sm:$0x1]
    %v842 = vlaneseq
    %v843 = vshrl.u32 %v842, 7
    %v844 = vsub.s32 0, %v843
    %v845 = vrot.slane %v840, %v844
    %v847 = vadd.f32 %v802, %v845
    %v848 = vadd.f32 %v807, %v845
    %v849 = vadd.f32 %v812, %v845
    %v850 = vadd.f32 %v817, %v845
    %v851 = vadd.f32 %v822, %v845
    %v852 = vadd.f32 %v827, %v845
    %v853 = vadd.f32 %v832, %v845
    %v854 = vadd.f32 %v837, %v845
    %v855 = vadd.f32 %v847, %v550
    %v856 = vadd.f32 %v848, %v551
    %v857 = vadd.f32 %v849, %v552
    %v858 = vadd.f32 %v850, %v553
    %v859 = vadd.f32 %v851, %v554
    %v860 = vadd.f32 %v852, %v555
    %v861 = vadd.f32 %v853, %v556
    %v862 = vadd.f32 %v854, %v557
    %v863 = vsel %vm150, %v855, 0.0
    %864 = vadd.xlane.f32.xlu0 %v863
    %v865 = vpop.xlane.xlu0 %864
    %v866 = vsel %vm150, %v856, 0.0
    %867 = vadd.xlane.f32.xlu0 %v866
    %v868 = vpop.xlane.xlu0 %867
    %v869 = vsel %vm150, %v857, 0.0
    %870 = vadd.xlane.f32.xlu0 %v869
    %v871 = vpop.xlane.xlu0 %870
    %v872 = vsel %vm150, %v858, 0.0
    %873 = vadd.xlane.f32.xlu0 %v872
    %v874 = vpop.xlane.xlu0 %873
    %v875 = vsel %vm150, %v859, 0.0
    %876 = vadd.xlane.f32.xlu0 %v875
    %v877 = vpop.xlane.xlu0 %876
    %v878 = vsel %vm150, %v860, 0.0
    %879 = vadd.xlane.f32.xlu0 %v878
    %v880 = vpop.xlane.xlu0 %879
    %v881 = vsel %vm150, %v861, 0.0
    %882 = vadd.xlane.f32.xlu0 %v881
    %v883 = vpop.xlane.xlu0 %882
    %v884 = vsel %vm150, %v862, 0.0
    %885 = vadd.xlane.f32.xlu0 %v884
    %v886 = vpop.xlane.xlu0 %885
    %v887 = vrcp.pop 32.0
    %v888 = vmul.f32 %v865, %v887
    %v889 = vmul.f32 %v868, %v887
    %v890 = vmul.f32 %v871, %v887
    %v891 = vmul.f32 %v874, %v887
    %v892 = vmul.f32 %v877, %v887
    %v893 = vmul.f32 %v880, %v887
    %v894 = vmul.f32 %v883, %v887
    %v895 = vmul.f32 %v886, %v887
    %v896 = vsub.f32 %v855, %v888
    %v897 = vsub.f32 %v856, %v889
    %v898 = vsub.f32 %v857, %v890
    %v899 = vsub.f32 %v858, %v891
    %v900 = vsub.f32 %v859, %v892
    %v901 = vsub.f32 %v860, %v893
    %v902 = vsub.f32 %v861, %v894
    %v903 = vsub.f32 %v862, %v895
    %v904 = vmul.f32 %v896, %v896
    %v905 = vmul.f32 %v897, %v897
    %v906 = vmul.f32 %v898, %v898
    %v907 = vmul.f32 %v899, %v899
    %v908 = vmul.f32 %v900, %v900
    %v909 = vmul.f32 %v901, %v901
    %v910 = vmul.f32 %v902, %v902
    %v911 = vmul.f32 %v903, %v903
    %v912 = vsel %vm150, %v904, 0.0
    %913 = vadd.xlane.f32.xlu0 %v912
    %v914 = vpop.xlane.xlu0 %913
    %v915 = vsel %vm150, %v905, 0.0
    %916 = vadd.xlane.f32.xlu0 %v915
    %v917 = vpop.xlane.xlu0 %916
    %v918 = vsel %vm150, %v906, 0.0
    %919 = vadd.xlane.f32.xlu0 %v918
    %v920 = vpop.xlane.xlu0 %919
    %v921 = vsel %vm150, %v907, 0.0
    %922 = vadd.xlane.f32.xlu0 %v921
    %v923 = vpop.xlane.xlu0 %922
    %v924 = vsel %vm150, %v908, 0.0
    %925 = vadd.xlane.f32.xlu0 %v924
    %v926 = vpop.xlane.xlu0 %925
    %v927 = vsel %vm150, %v909, 0.0
    %928 = vadd.xlane.f32.xlu0 %v927
    %v929 = vpop.xlane.xlu0 %928
    %v930 = vsel %vm150, %v910, 0.0
    %931 = vadd.xlane.f32.xlu0 %v930
    %v932 = vpop.xlane.xlu0 %931
    %v933 = vsel %vm150, %v911, 0.0
    %934 = vadd.xlane.f32.xlu0 %v933
    %v935 = vpop.xlane.xlu0 %934
    %v936 = vmul.f32 %v914, %v887
    %v937 = vmul.f32 %v917, %v887
    %v938 = vmul.f32 %v920, %v887
    %v939 = vmul.f32 %v923, %v887
    %v940 = vmul.f32 %v926, %v887
    %v941 = vmul.f32 %v929, %v887
    %v942 = vmul.f32 %v932, %v887
    %v943 = vmul.f32 %v935, %v887
    %v944 = vadd.f32 %v936, 1e-05
    %v945 = vadd.f32 %v937, 1e-05
    %v946 = vadd.f32 %v938, 1e-05
    %v947 = vadd.f32 %v939, 1e-05
    %v948 = vadd.f32 %v940, 1e-05
    %v949 = vadd.f32 %v941, 1e-05
    %v950 = vadd.f32 %v942, 1e-05
    %v951 = vadd.f32 %v943, 1e-05
    %v952 = vrsqrt.pop %v944
    %v953 = vrsqrt.pop %v945
    %v954 = vrsqrt.pop %v946
    %v955 = vrsqrt.pop %v947
    %v956 = vrsqrt.pop %v948
    %v957 = vrsqrt.pop %v949
    %v958 = vrsqrt.pop %v950
    %v959 = vrsqrt.pop %v951
    %v960 = vmul.f32 %v896, %v952
    %v961 = vmul.f32 %v897, %v953
    %v962 = vmul.f32 %v898, %v954
    %v963 = vmul.f32 %v899, %v955
    %v964 = vmul.f32 %v900, %v956
    %v965 = vmul.f32 %v901, %v957
    %v966 = vmul.f32 %v902, %v958
    %v967 = vmul.f32 %v903, %v959
    %v968 = vld [vmem:[#allocation8] sm:$0x1]
    %v970 = vlaneseq
    %v971 = vshrl.u32 %v970, 7
    %v972 = vsub.s32 0, %v971
    %v973 = vrot.slane %v968, %v972
    %v975 = vmul.f32 %v960, %v973
    %v976 = vmul.f32 %v961, %v973
    %v977 = vmul.f32 %v962, %v973
    %v978 = vmul.f32 %v963, %v973
    %v979 = vmul.f32 %v964, %v973
    %v980 = vmul.f32 %v965, %v973
    %v981 = vmul.f32 %v966, %v973
    %v982 = vmul.f32 %v967, %v973
    %v983 = vld [vmem:[#allocation10] sm:$0x1]
    %v985 = vlaneseq
    %v986 = vshrl.u32 %v985, 7
    %v987 = vsub.s32 0, %v986
    %v988 = vrot.slane %v983, %v987
    %v990 = vadd.f32 %v975, %v988
    %v991 = vadd.f32 %v976, %v988
    %v992 = vadd.f32 %v977, %v988
    %v993 = vadd.f32 %v978, %v988
    %v994 = vadd.f32 %v979, %v988
    %v995 = vadd.f32 %v980, %v988
    %v996 = vadd.f32 %v981, %v988
    %v997 = vadd.f32 %v982, %v988
    %v998 = vld [vmem:[%s9] sm:$0xff]
    %v999 = vld [vmem:[%s9 + $0x8] sm:$0xff]
    %v1000 = vld [vmem:[%s9 + $0x10] sm:$0xff]
    %v1001 = vld [vmem:[%s9 + $0x18] sm:$0xff]
    %v1002 = vld [vmem:[%s10] sm:$0x1]
    %v1004 = vlaneseq
    %v1005 = vshrl.u32 %v1004, 7
    %v1006 = vsub.s32 0, %v1005
    %v1007 = vrot.slane %v1002, %v1006
    %v1010 = vsel %vm150, %v990, 0
    %v1013 = vsel %vm150, %v991, 0
    %v1016 = vsel %vm150, %v992, 0
    %v1019 = vsel %vm150, %v993, 0
    %v1022 = vsel %vm150, %v994, 0
    %v1025 = vsel %vm150, %v995, 0
    %v1028 = vsel %vm150, %v996, 0
    %v1031 = vsel %vm150, %v997, 0
    %1033 = vmatprep.subr.mxu0 0.0
    %1034 = vmatpush1.msra.mxu0 %v998
    %1035 = vmatprep.subr.mxu0 0.0
    %1036 = vmatpush1.msra.mxu0 %v999
    %1037 = vmatprep.subr.mxu0 0.0
    %1038 = vmatpush1.msra.mxu0 %v1000
    %1039 = vmatprep.subr.mxu0 0.0
    %1040 = vmatpush1.msra.mxu0 %v1001
    %1041 = vmatprep.subr.mxu0 0.0
    %1042 = vmatpush1.msra.mxu0 0.0
    %1043 = vmatprep.subr.mxu0 0.0
    %1044 = vmatpush1.msra.mxu0 0.0
    %1045 = vmatprep.subr.mxu0 0.0
    %1046 = vmatpush1.msra.mxu0 0.0
    %1047 = vmatprep.subr.mxu0 0.0
    %1048 = vmatpush1.msra.mxu0 0.0
    %1049 = vmatprep.subr.mxu0 0.0
    %1050 = vmatpush1.msra.mxu0 0.0
    %1051 = vmatprep.subr.mxu0 0.0
    %1052 = vmatpush1.msra.mxu0 0.0
    %1053 = vmatprep.subr.mxu0 0.0
    %1054 = vmatpush1.msra.mxu0 0.0
    %1055 = vmatprep.subr.mxu0 0.0
    %1056 = vmatpush1.msra.mxu0 0.0
    %1057 = vmatprep.subr.mxu0 0.0
    %1058 = vmatpush1.msra.mxu0 0.0
    %1059 = vmatprep.subr.mxu0 0.0
    %1060 = vmatpush1.msra.mxu0 0.0
    %1061 = vmatprep.subr.mxu0 0.0
    %1062 = vmatpush1.msra.mxu0 0.0
    %1063 = vmatprep.subr.mxu0 0.0
    %1064 = vmatpush1.msra.mxu0 0.0
    %1065 = vmatprep.subr.mxu0 0.0
    %1066 = vmatpush1.msra.mxu0 0.0
    %1067 = vmatprep.subr.mxu0 0.0
    %1068 = vmatpush1.msra.mxu0 0.0
    %1069 = vmatprep.subr.mxu0 0.0
    %1070 = vmatpush1.msra.mxu0 0.0
    %1071 = vmatprep.subr.mxu0 0.0
    %1072 = vmatpush1.msra.mxu0 0.0
    %1073 = vmatprep.subr.mxu0 0.0
    %1074 = vmatpush1.msra.mxu0 0.0
    %1075 = vmatprep.subr.mxu0 0.0
    %1076 = vmatpush1.msra.mxu0 0.0
    %1077 = vmatprep.subr.mxu0 0.0
    %1078 = vmatpush1.msra.mxu0 0.0
    %1079 = vmatprep.subr.mxu0 0.0
    %1080 = vmatpush1.msra.mxu0 0.0
    %1081 = vmatprep.subr.mxu0 0.0
    %1082 = vmatpush1.msra.mxu0 0.0
    %1083 = vmatprep.subr.mxu0 0.0
    %1084 = vmatpush1.msra.mxu0 0.0
    %1085 = vmatprep.subr.mxu0 0.0
    %1086 = vmatpush1.msra.mxu0 0.0
    %1087 = vmatprep.subr.mxu0 0.0
    %1088 = vmatpush1.msra.mxu0 0.0
    %1089 = vmatprep.subr.mxu0 0.0
    %1090 = vmatpush1.msra.mxu0 0.0
    %1091 = vmatprep.subr.mxu0 0.0
    %1092 = vmatpush1.msra.mxu0 0.0
    %1093 = vmatprep.subr.mxu0 0.0
    %1094 = vmatpush1.msra.mxu0 0.0
    %1095 = vmatprep.subr.mxu0 0.0
    %1096 = vmatpush1.msra.mxu0 0.0
    %1097 = vmatprep.mubr.f32.mxu0 0.0
    %1098 = vmatmul.mubr.f32.gmra.mrb[0].mxu0 %v1010
    %v1099 = vpop.f32.mrb[0].mxu0
    %v1100 = vadd.f32 %v1007, %v1099
    %v1101 = vpop.f32.mrb[0].mxu0
    %1102 = vmatprep.mubr.f32.mxu0 0.0
    %1103 = vmatmul.mubr.f32.gmra.mrb[0].mxu0 %v1013
    %v1104 = vpop.f32.mrb[0].mxu0
    %v1105 = vadd.f32 %v1007, %v1104
    %v1106 = vpop.f32.mrb[0].mxu0
    %1107 = vmatprep.mubr.f32.mxu0 0.0
    %1108 = vmatmul.mubr.f32.gmra.mrb[0].mxu0 %v1016
    %v1109 = vpop.f32.mrb[0].mxu0
    %v1110 = vadd.f32 %v1007, %v1109
    %v1111 = vpop.f32.mrb[0].mxu0
    %1112 = vmatprep.mubr.f32.mxu0 0.0
    %1113 = vmatmul.mubr.f32.gmra.mrb[0].mxu0 %v1019
    %v1114 = vpop.f32.mrb[0].mxu0
    %v1115 = vadd.f32 %v1007, %v1114
    %v1116 = vpop.f32.mrb[0].mxu0
    %1117 = vmatprep.mubr.f32.mxu0 0.0
    %1118 = vmatmul.mubr.f32.gmra.mrb[0].mxu0 %v1022
    %v1119 = vpop.f32.mrb[0].mxu0
    %v1120 = vadd.f32 %v1007, %v1119
    %v1121 = vpop.f32.mrb[0].mxu0
    %1122 = vmatprep.mubr.f32.mxu0 0.0
    %1123 = vmatmul.mubr.f32.gmra.mrb[0].mxu0 %v1025
    %v1124 = vpop.f32.mrb[0].mxu0
    %v1125 = vadd.f32 %v1007, %v1124
    %v1126 = vpop.f32.mrb[0].mxu0
    %1127 = vmatprep.mubr.f32.mxu0 0.0
    %1128 = vmatmul.mubr.f32.gmra.mrb[0].mxu0 %v1028
    %v1129 = vpop.f32.mrb[0].mxu0
    %v1130 = vadd.f32 %v1007, %v1129
    %v1131 = vpop.f32.mrb[0].mxu0
    %1132 = vmatprep.mubr.f32.mxu0 0.0
    %1133 = vmatmul.mubr.f32.gmra.mrb[0].mxu0 %v1031
    %v1134 = vpop.f32.mrb[0].mxu0
    %v1135 = vadd.f32 %v1007, %v1134
    %v1136 = vpop.f32.mrb[0].mxu0
    %1137 = vdwg.mxu0
    %v1138 = vmax.f32 %v1100, 0.0
    %v1139 = vmax.f32 %v1105, 0.0
    %v1140 = vmax.f32 %v1110, 0.0
    %v1141 = vmax.f32 %v1115, 0.0
    %v1142 = vmax.f32 %v1120, 0.0
    %v1143 = vmax.f32 %v1125, 0.0
    %v1144 = vmax.f32 %v1130, 0.0
    %v1145 = vmax.f32 %v1135, 0.0
    %v1146 = vld [vmem:[%s11] sm:$0xff]
    %v1147 = vld [vmem:[%s11 + $0x8] sm:$0xff]
    %v1148 = vld [vmem:[%s11 + $0x10] sm:$0xff]
    %v1149 = vld [vmem:[%s11 + $0x18] sm:$0xff]
    %v1150 = vld [vmem:[%s11 + $0x20] sm:$0xff]
    %v1151 = vld [vmem:[%s11 + $0x28] sm:$0xff]
    %v1152 = vld [vmem:[%s11 + $0x30] sm:$0xff]
    %v1153 = vld [vmem:[%s11 + $0x38] sm:$0xff]
    %v1154 = vld [vmem:[%s11 + $0x40] sm:$0xff]
    %v1155 = vld [vmem:[%s11 + $0x48] sm:$0xff]
    %v1156 = vld [vmem:[%s11 + $0x50] sm:$0xff]
    %v1157 = vld [vmem:[%s11 + $0x58] sm:$0xff]
    %v1158 = vld [vmem:[%s12] sm:$0x1]
    %v1160 = vlaneseq
    %v1161 = vshrl.u32 %v1160, 7
    %v1162 = vsub.s32 0, %v1161
    %v1163 = vrot.slane %v1158, %v1162
    %vm1165 = vcmask 785408
    %v1167 = vsel %vm1165, %v1138, 0
    %v1170 = vsel %vm1165, %v1139, 0
    %v1173 = vsel %vm1165, %v1140, 0
    %v1176 = vsel %vm1165, %v1141, 0
    %v1179 = vsel %vm1165, %v1142, 0
    %v1182 = vsel %vm1165, %v1143, 0
    %v1185 = vsel %vm1165, %v1144, 0
    %v1188 = vsel %vm1165, %v1145, 0
    %1190 = vmatprep.subr.mxu0 0.0
    %1191 = vmatpush1.msra.mxu0 %v1146
    %1192 = vmatprep.subr.mxu0 0.0
    %1193 = vmatpush1.msra.mxu0 %v1147
    %1194 = vmatprep.subr.mxu0 0.0
    %1195 = vmatpush1.msra.mxu0 %v1148
    %1196 = vmatprep.subr.mxu0 0.0
    %1197 = vmatpush1.msra.mxu0 %v1149
    %1198 = vmatprep.subr.mxu0 0.0
    %1199 = vmatpush1.msra.mxu0 %v1150
    %1200 = vmatprep.subr.mxu0 0.0
    %1201 = vmatpush1.msra.mxu0 %v1151
    %1202 = vmatprep.subr.mxu0 0.0
    %1203 = vmatpush1.msra.mxu0 %v1152
    %1204 = vmatprep.subr.mxu0 0.0
    %1205 = vmatpush1.msra.mxu0 %v1153
    %1206 = vmatprep.subr.mxu0 0.0
    %1207 = vmatpush1.msra.mxu0 %v1154
    %1208 = vmatprep.subr.mxu0 0.0
    %1209 = vmatpush1.msra.mxu0 %v1155
    %1210 = vmatprep.subr.mxu0 0.0
    %1211 = vmatpush1.msra.mxu0 %v1156
    %1212 = vmatprep.subr.mxu0 0.0
    %1213 = vmatpush1.msra.mxu0 %v1157
    %1214 = vmatprep.subr.mxu0 0.0
    %1215 = vmatpush1.msra.mxu0 0.0
    %1216 = vmatprep.subr.mxu0 0.0
    %1217 = vmatpush1.msra.mxu0 0.0
    %1218 = vmatprep.subr.mxu0 0.0
    %1219 = vmatpush1.msra.mxu0 0.0
    %1220 = vmatprep.subr.mxu0 0.0
    %1221 = vmatpush1.msra.mxu0 0.0
    %1222 = vmatprep.subr.mxu0 0.0
    %1223 = vmatpush1.msra.mxu0 0.0
    %1224 = vmatprep.subr.mxu0 0.0
    %1225 = vmatpush1.msra.mxu0 0.0
    %1226 = vmatprep.subr.mxu0 0.0
    %1227 = vmatpush1.msra.mxu0 0.0
    %1228 = vmatprep.subr.mxu0 0.0
    %1229 = vmatpush1.msra.mxu0 0.0
    %1230 = vmatprep.subr.mxu0 0.0
    %1231 = vmatpush1.msra.mxu0 0.0
    %1232 = vmatprep.subr.mxu0 0.0
    %1233 = vmatpush1.msra.mxu0 0.0
    %1234 = vmatprep.subr.mxu0 0.0
    %1235 = vmatpush1.msra.mxu0 0.0
    %1236 = vmatprep.subr.mxu0 0.0
    %1237 = vmatpush1.msra.mxu0 0.0
    %1238 = vmatprep.subr.mxu0 0.0
    %1239 = vmatpush1.msra.mxu0 0.0
    %1240 = vmatprep.subr.mxu0 0.0
    %1241 = vmatpush1.msra.mxu0 0.0
    %1242 = vmatprep.subr.mxu0 0.0
    %1243 = vmatpush1.msra.mxu0 0.0
    %1244 = vmatprep.subr.mxu0 0.0
    %1245 = vmatpush1.msra.mxu0 0.0
    %1246 = vmatprep.subr.mxu0 0.0
    %1247 = vmatpush1.msra.mxu0 0.0
    %1248 = vmatprep.subr.mxu0 0.0
    %1249 = vmatpush1.msra.mxu0 0.0
    %1250 = vmatprep.subr.mxu0 0.0
    %1251 = vmatpush1.msra.mxu0 0.0
    %1252 = vmatprep.subr.mxu0 0.0
    %1253 = vmatpush1.msra.mxu0 0.0
    %1254 = vmatprep.mubr.f32.mxu0 0.0
    %1255 = vmatmul.mubr.f32.gmra.mrb[0].mxu0 %v1167
    %v1256 = vpop.f32.mrb[0].mxu0
    %v1257 = vadd.f32 %v1163, %v1256
    %v1258 = vpop.f32.mrb[0].mxu0
    %1259 = vmatprep.mubr.f32.mxu0 0.0
    %1260 = vmatmul.mubr.f32.gmra.mrb[0].mxu0 %v1170
    %v1261 = vpop.f32.mrb[0].mxu0
    %v1262 = vadd.f32 %v1163, %v1261
    %v1263 = vpop.f32.mrb[0].mxu0
    %1264 = vmatprep.mubr.f32.mxu0 0.0
    %1265 = vmatmul.mubr.f32.gmra.mrb[0].mxu0 %v1173
    %v1266 = vpop.f32.mrb[0].mxu0
    %v1267 = vadd.f32 %v1163, %v1266
    %v1268 = vpop.f32.mrb[0].mxu0
    %1269 = vmatprep.mubr.f32.mxu0 0.0
    %1270 = vmatmul.mubr.f32.gmra.mrb[0].mxu0 %v1176
    %v1271 = vpop.f32.mrb[0].mxu0
    %v1272 = vadd.f32 %v1163, %v1271
    %v1273 = vpop.f32.mrb[0].mxu0
    %1274 = vmatprep.mubr.f32.mxu0 0.0
    %1275 = vmatmul.mubr.f32.gmra.mrb[0].mxu0 %v1179
    %v1276 = vpop.f32.mrb[0].mxu0
    %v1277 = vadd.f32 %v1163, %v1276
    %v1278 = vpop.f32.mrb[0].mxu0
    %1279 = vmatprep.mubr.f32.mxu0 0.0
    %1280 = vmatmul.mubr.f32.gmra.mrb[0].mxu0 %v1182
    %v1281 = vpop.f32.mrb[0].mxu0
    %v1282 = vadd.f32 %v1163, %v1281
    %v1283 = vpop.f32.mrb[0].mxu0
    %1284 = vmatprep.mubr.f32.mxu0 0.0
    %1285 = vmatmul.mubr.f32.gmra.mrb[0].mxu0 %v1185
    %v1286 = vpop.f32.mrb[0].mxu0
    %v1287 = vadd.f32 %v1163, %v1286
    %v1288 = vpop.f32.mrb[0].mxu0
    %1289 = vmatprep.mubr.f32.mxu0 0.0
    %1290 = vmatmul.mubr.f32.gmra.mrb[0].mxu0 %v1188
    %v1291 = vpop.f32.mrb[0].mxu0
    %v1292 = vadd.f32 %v1163, %v1291
    %v1293 = vpop.f32.mrb[0].mxu0
    %1294 = vdwg.mxu0
    %v1295 = vsel %vm150, %v1257, -inf
    %v1296 = vsel %vm150, %v1262, -inf
    %v1297 = vsel %vm150, %v1267, -inf
    %v1298 = vsel %vm150, %v1272, -inf
    %v1299 = vsel %vm150, %v1277, -inf
    %v1300 = vmax.f32 %v1295, %v1299
    %v1301 = vsel %vm150, %v1282, -inf
    %v1302 = vmax.f32 %v1296, %v1301
    %v1303 = vsel %vm150, %v1287, -inf
    %v1304 = vmax.f32 %v1297, %v1303
    %v1305 = vsel %vm150, %v1292, -inf
    %v1306 = vmax.f32 %v1298, %v1305
    %v1307 = vmax.f32 %v1300, %v1302
    %v1308 = vmax.f32 %v1304, %v1306
    %v1309 = vmax.f32 %v1307, %v1308
    %v1310 = vsel %vm150, %v1257, 0.0
    %v1311 = vsel %vm150, %v1262, 0.0
    %v1312 = vadd.f32 %v1310, %v1311
    %v1313 = vsel %vm150, %v1267, 0.0
    %v1314 = vadd.f32 %v1312, %v1313
    %v1315 = vsel %vm150, %v1272, 0.0
    %v1316 = vadd.f32 %v1314, %v1315
    %v1317 = vsel %vm150, %v1277, 0.0
    %v1318 = vadd.f32 %v1316, %v1317
    %v1319 = vsel %vm150, %v1282, 0.0
    %v1320 = vadd.f32 %v1318, %v1319
    %v1321 = vsel %vm150, %v1287, 0.0
    %v1322 = vadd.f32 %v1320, %v1321
    %v1323 = vsel %vm150, %v1292, 0.0
    %v1324 = vadd.f32 %v1322, %v1323
    %v1325 = vmul.f32 %v1324, 0.125
    %v1326 = vld [vmem:[%s13] sm:$0xff]
    %v1327 = vld [vmem:[%s13 + $0x8] sm:$0xff]
    %v1328 = vld [vmem:[%s13 + $0x10] sm:$0xff]
    %v1329 = vld [vmem:[%s13 + $0x18] sm:$0xff]
    %v1330 = vld [vmem:[#allocation11] sm:$0xff]
    %v1331 = vld [vmem:[#allocation11 + $0x8] sm:$0xff]
    %v1332 = vld [vmem:[#allocation11 + $0x10] sm:$0xff]
    %v1333 = vld [vmem:[#allocation11 + $0x18] sm:$0xff]
    %v1335 = vsel %vm150, %v1325, 0
    %1337 = vmatprep.subr.mxu0 0.0
    %1338 = vmatpush1.msra.mxu0 %v1330
    %1339 = vmatprep.subr.mxu0 0.0
    %1340 = vmatpush1.msra.mxu0 %v1331
    %1341 = vmatprep.subr.mxu0 0.0
    %1342 = vmatpush1.msra.mxu0 %v1332
    %1343 = vmatprep.subr.mxu0 0.0
    %1344 = vmatpush1.msra.mxu0 %v1333
    %1345 = vmatprep.subr.mxu0 0.0
    %1346 = vmatpush1.msra.mxu0 0.0
    %1347 = vmatprep.subr.mxu0 0.0
    %1348 = vmatpush1.msra.mxu0 0.0
    %1349 = vmatprep.subr.mxu0 0.0
    %1350 = vmatpush1.msra.mxu0 0.0
    %1351 = vmatprep.subr.mxu0 0.0
    %1352 = vmatpush1.msra.mxu0 0.0
    %1353 = vmatprep.subr.mxu0 0.0
    %1354 = vmatpush1.msra.mxu0 0.0
    %1355 = vmatprep.subr.mxu0 0.0
    %1356 = vmatpush1.msra.mxu0 0.0
    %1357 = vmatprep.subr.mxu0 0.0
    %1358 = vmatpush1.msra.mxu0 0.0
    %1359 = vmatprep.subr.mxu0 0.0
    %1360 = vmatpush1.msra.mxu0 0.0
    %1361 = vmatprep.subr.mxu0 0.0
    %1362 = vmatpush1.msra.mxu0 0.0
    %1363 = vmatprep.subr.mxu0 0.0
    %1364 = vmatpush1.msra.mxu0 0.0
    %1365 = vmatprep.subr.mxu0 0.0
    %1366 = vmatpush1.msra.mxu0 0.0
    %1367 = vmatprep.subr.mxu0 0.0
    %1368 = vmatpush1.msra.mxu0 0.0
    %1369 = vmatprep.subr.mxu0 0.0
    %1370 = vmatpush1.msra.mxu0 0.0
    %1371 = vmatprep.subr.mxu0 0.0
    %1372 = vmatpush1.msra.mxu0 0.0
    %1373 = vmatprep.subr.mxu0 0.0
    %1374 = vmatpush1.msra.mxu0 0.0
    %1375 = vmatprep.subr.mxu0 0.0
    %1376 = vmatpush1.msra.mxu0 0.0
    %1377 = vmatprep.subr.mxu0 0.0
    %1378 = vmatpush1.msra.mxu0 0.0
    %1379 = vmatprep.subr.mxu0 0.0
    %1380 = vmatpush1.msra.mxu0 0.0
    %1381 = vmatprep.subr.mxu0 0.0
    %1382 = vmatpush1.msra.mxu0 0.0
    %1383 = vmatprep.subr.mxu0 0.0
    %1384 = vmatpush1.msra.mxu0 0.0
    %1385 = vmatprep.subr.mxu0 0.0
    %1386 = vmatpush1.msra.mxu0 0.0
    %1387 = vmatprep.subr.mxu0 0.0
    %1388 = vmatpush1.msra.mxu0 0.0
    %1389 = vmatprep.subr.mxu0 0.0
    %1390 = vmatpush1.msra.mxu0 0.0
    %1391 = vmatprep.subr.mxu0 0.0
    %1392 = vmatpush1.msra.mxu0 0.0
    %1393 = vmatprep.subr.mxu0 0.0
    %1394 = vmatpush1.msra.mxu0 0.0
    %1395 = vmatprep.subr.mxu0 0.0
    %1396 = vmatpush1.msra.mxu0 0.0
    %1397 = vmatprep.subr.mxu0 0.0
    %1398 = vmatpush1.msra.mxu0 0.0
    %1399 = vmatprep.subr.mxu0 0.0
    %1400 = vmatpush1.msra.mxu0 0.0
    %1401 = vmatprep.mubr.f32.mxu0 0.0
    %1402 = vmatmul.mubr.f32.gmra.mrb[0].mxu0 %v1335
    %v1403 = vpop.f32.mrb[0].mxu0
    %v1404 = vadd.f32 0.0, %v1403
    %v1405 = vpop.f32.mrb[0].mxu0
    %1406 = vdwg.mxu0
    %v1408 = vsel %vm150, %v1309, 0
    %1410 = vmatprep.subr.mxu0 0.0
    %1411 = vmatpush1.msra.mxu0 %v1326
    %1412 = vmatprep.subr.mxu0 0.0
    %1413 = vmatpush1.msra.mxu0 %v1327
    %1414 = vmatprep.subr.mxu0 0.0
    %1415 = vmatpush1.msra.mxu0 %v1328
    %1416 = vmatprep.subr.mxu0 0.0
    %1417 = vmatpush1.msra.mxu0 %v1329
    %1418 = vmatprep.subr.mxu0 0.0
    %1419 = vmatpush1.msra.mxu0 0.0
    %1420 = vmatprep.subr.mxu0 0.0
    %1421 = vmatpush1.msra.mxu0 0.0
    %1422 = vmatprep.subr.mxu0 0.0
    %1423 = vmatpush1.msra.mxu0 0.0
    %1424 = vmatprep.subr.mxu0 0.0
    %1425 = vmatpush1.msra.mxu0 0.0
    %1426 = vmatprep.subr.mxu0 0.0
    %1427 = vmatpush1.msra.mxu0 0.0
    %1428 = vmatprep.subr.mxu0 0.0
    %1429 = vmatpush1.msra.mxu0 0.0
    %1430 = vmatprep.subr.mxu0 0.0
    %1431 = vmatpush1.msra.mxu0 0.0
    %1432 = vmatprep.subr.mxu0 0.0
    %1433 = vmatpush1.msra.mxu0 0.0
    %1434 = vmatprep.subr.mxu0 0.0
    %1435 = vmatpush1.msra.mxu0 0.0
    %1436 = vmatprep.subr.mxu0 0.0
    %1437 = vmatpush1.msra.mxu0 0.0
    %1438 = vmatprep.subr.mxu0 0.0
    %1439 = vmatpush1.msra.mxu0 0.0
    %1440 = vmatprep.subr.mxu0 0.0
    %1441 = vmatpush1.msra.mxu0 0.0
    %1442 = vmatprep.subr.mxu0 0.0
    %1443 = vmatpush1.msra.mxu0 0.0
    %1444 = vmatprep.subr.mxu0 0.0
    %1445 = vmatpush1.msra.mxu0 0.0
    %1446 = vmatprep.subr.mxu0 0.0
    %1447 = vmatpush1.msra.mxu0 0.0
    %1448 = vmatprep.subr.mxu0 0.0
    %1449 = vmatpush1.msra.mxu0 0.0
    %1450 = vmatprep.subr.mxu0 0.0
    %1451 = vmatpush1.msra.mxu0 0.0
    %1452 = vmatprep.subr.mxu0 0.0
    %1453 = vmatpush1.msra.mxu0 0.0
    %1454 = vmatprep.subr.mxu0 0.0
    %1455 = vmatpush1.msra.mxu0 0.0
    %1456 = vmatprep.subr.mxu0 0.0
    %1457 = vmatpush1.msra.mxu0 0.0
    %1458 = vmatprep.subr.mxu0 0.0
    %1459 = vmatpush1.msra.mxu0 0.0
    %1460 = vmatprep.subr.mxu0 0.0
    %1461 = vmatpush1.msra.mxu0 0.0
    %1462 = vmatprep.subr.mxu0 0.0
    %1463 = vmatpush1.msra.mxu0 0.0
    %1464 = vmatprep.subr.mxu0 0.0
    %1465 = vmatpush1.msra.mxu0 0.0
    %1466 = vmatprep.subr.mxu0 0.0
    %1467 = vmatpush1.msra.mxu0 0.0
    %1468 = vmatprep.subr.mxu0 0.0
    %1469 = vmatpush1.msra.mxu0 0.0
    %1470 = vmatprep.subr.mxu0 0.0
    %1471 = vmatpush1.msra.mxu0 0.0
    %1472 = vmatprep.subr.mxu0 0.0
    %1473 = vmatpush1.msra.mxu0 0.0
    %1474 = vmatprep.mubr.f32.mxu0 0.0
    %1475 = vmatmul.mubr.f32.gmra.mrb[0].mxu0 %v1408
    %v1476 = vpop.f32.mrb[0].mxu0
    %v1477 = vadd.f32 %v1404, %v1476
    %v1478 = vpop.f32.mrb[0].mxu0
    %1479 = vdwg.mxu0
    %v1480 = vld [vmem:[%s15] sm:$0x1]
    %v1482 = vlaneseq
    %v1483 = vshrl.u32 %v1482, 7
    %v1484 = vsub.s32 0, %v1483
    %v1485 = vrot.slane %v1480, %v1484
    %v1487 = vadd.f32 %v1477, %v1485
    %v1488 = vtanh.pop %v1487
    %v1489 = vld [vmem:[#allocation13] sm:$0xff]
    %v1490 = vld [vmem:[#allocation13 + $0x8] sm:$0xff]
    %v1491 = vld [vmem:[#allocation13 + $0x10] sm:$0xff]
    %v1492 = vld [vmem:[#allocation13 + $0x18] sm:$0xff]
    %v1493 = vld [vmem:[%s17] sm:$0x1]
    %v1495 = vlaneseq
    %v1496 = vshrl.u32 %v1495, 7
    %v1497 = vsub.s32 0, %v1496
    %v1498 = vrot.slane %v1493, %v1497
    %v1501 = vsel %vm150, %v1488, 0
    %1503 = vmatprep.subr.mxu0 0.0
    %1504 = vmatpush1.msra.mxu0 %v1489
    %1505 = vmatprep.subr.mxu0 0.0
    %1506 = vmatpush1.msra.mxu0 %v1490
    %1507 = vmatprep.subr.mxu0 0.0
    %1508 = vmatpush1.msra.mxu0 %v1491
    %1509 = vmatprep.subr.mxu0 0.0
    %1510 = vmatpush1.msra.mxu0 %v1492
    %1511 = vmatprep.subr.mxu0 0.0
    %1512 = vmatpush1.msra.mxu0 0.0
    %1513 = vmatprep.subr.mxu0 0.0
    %1514 = vmatpush1.msra.mxu0 0.0
    %1515 = vmatprep.subr.mxu0 0.0
    %1516 = vmatpush1.msra.mxu0 0.0
    %1517 = vmatprep.subr.mxu0 0.0
    %1518 = vmatpush1.msra.mxu0 0.0
    %1519 = vmatprep.subr.mxu0 0.0
    %1520 = vmatpush1.msra.mxu0 0.0
    %1521 = vmatprep.subr.mxu0 0.0
    %1522 = vmatpush1.msra.mxu0 0.0
    %1523 = vmatprep.subr.mxu0 0.0
    %1524 = vmatpush1.msra.mxu0 0.0
    %1525 = vmatprep.subr.mxu0 0.0
    %1526 = vmatpush1.msra.mxu0 0.0
    %1527 = vmatprep.subr.mxu0 0.0
    %1528 = vmatpush1.msra.mxu0 0.0
    %1529 = vmatprep.subr.mxu0 0.0
    %1530 = vmatpush1.msra.mxu0 0.0
    %1531 = vmatprep.subr.mxu0 0.0
    %1532 = vmatpush1.msra.mxu0 0.0
    %1533 = vmatprep.subr.mxu0 0.0
    %1534 = vmatpush1.msra.mxu0 0.0
    %1535 = vmatprep.subr.mxu0 0.0
    %1536 = vmatpush1.msra.mxu0 0.0
    %1537 = vmatprep.subr.mxu0 0.0
    %1538 = vmatpush1.msra.mxu0 0.0
    %1539 = vmatprep.subr.mxu0 0.0
    %1540 = vmatpush1.msra.mxu0 0.0
    %1541 = vmatprep.subr.mxu0 0.0
    %1542 = vmatpush1.msra.mxu0 0.0
    %1543 = vmatprep.subr.mxu0 0.0
    %1544 = vmatpush1.msra.mxu0 0.0
    %1545 = vmatprep.subr.mxu0 0.0
    %1546 = vmatpush1.msra.mxu0 0.0
    %1547 = vmatprep.subr.mxu0 0.0
    %1548 = vmatpush1.msra.mxu0 0.0
    %1549 = vmatprep.subr.mxu0 0.0
    %1550 = vmatpush1.msra.mxu0 0.0
    %1551 = vmatprep.subr.mxu0 0.0
    %1552 = vmatpush1.msra.mxu0 0.0
    %1553 = vmatprep.subr.mxu0 0.0
    %1554 = vmatpush1.msra.mxu0 0.0
    %1555 = vmatprep.subr.mxu0 0.0
    %1556 = vmatpush1.msra.mxu0 0.0
    %1557 = vmatprep.subr.mxu0 0.0
    %1558 = vmatpush1.msra.mxu0 0.0
    %1559 = vmatprep.subr.mxu0 0.0
    %1560 = vmatpush1.msra.mxu0 0.0
    %1561 = vmatprep.subr.mxu0 0.0
    %1562 = vmatpush1.msra.mxu0 0.0
    %1563 = vmatprep.subr.mxu0 0.0
    %1564 = vmatpush1.msra.mxu0 0.0
    %1565 = vmatprep.subr.mxu0 0.0
    %1566 = vmatpush1.msra.mxu0 0.0
    %1567 = vmatprep.mubr.f32.mxu0 0.0
    %1568 = vmatmul.mubr.f32.gmra.mrb[0].mxu0 %v1501
    %v1569 = vpop.f32.mrb[0].mxu0
    %v1570 = vadd.f32 %v1498, %v1569
    %v1571 = vpop.f32.mrb[0].mxu0
    %1572 = vdwg.mxu0
    %1573 = vst [vmem:[#allocation14] sm:$0xff] %v1570
    // Predicated region
    $region101: #{tpu_custom_call.1} parent=1 // pred_check
      _
    $region102: #{tpu_custom_call.1} parent=1 // pred_check_branch
      %1575 = sbr.rel (0) target = $region104
    $region103: #{tpu_custom_call.1} parent=1 // pred_region
      %s1577 = ssub.s32 128, 128
      %1578 = vsyncadd [#allocation7], %s1577
      %s1580 = sshll.u32 [#allocation14], 4
      %s1581 = int_to_ptr.vmem [resolvable:$true] %s1580
      %1583 = dma.vmem_to_hbm [thread:$0]  %s1581, 128, %s18, [#allocation7]
    $region104: #{tpu_custom_call.1} parent=1 // pred_fallthru
      _
    // Predicated region
    $region105: #{tpu_custom_call.1} parent=1 // pred_check
      _
    $region106: #{tpu_custom_call.1} parent=1 // pred_check_branch
      %1585 = sbr.rel (0) target = $region108
    $region107: #{tpu_custom_call.1} parent=1 // pred_region
      %1586 = dma.done [#allocation7], 128
    $region108: #{tpu_custom_call.1} parent=1 // pred_fallthru
      _
    %1587 = vsyncpa [#allocation6], 1
    %1588 = vsyncpa [#allocation9], 1
    %1589 = vsyncpa [#allocation12], 1
    %1590 = vsyncpa [#allocation7], 1

</llo_original>
